<compile_context>
chip_gen: v5e
topology: v5e:2x2
jax: 0.10.0
libtpu: 0.0.40
codegen_flags: <defaults>
</compile_context>

<pallas_src>
import jax
import jax.numpy as jnp
import numpy as np
from jax.experimental import pallas as pl
from jax.experimental.pallas import tpu as pltpu


# ----------------------------------------------------------------------------
# Host-side constant builders (pool + pad + tap-gather folded into one matrix).
# ----------------------------------------------------------------------------
def _tap_matrix_valid(l_in, k):
    """A s.t. (A @ h)[t*Lc + l, :] == h[l + t, :]  (conv 'valid', no pre-pool)."""
    lc = l_in - k + 1
    a = np.zeros((k * lc, l_in), np.float32)
    for t in range(k):
        for l in range(lc):
            a[t * lc + l, l + t] = 1.0
    return a


def _tap_matrix_pool_same(l_in, k):
    """A s.t. (A @ h)[t*Lp + l, :] == zero-padded(avg_pool2(h))[l + t, :].

    avg_pool1d(kernel=2, stride=2) truncates an odd tail (torch semantics);
    'same' padding assumes odd k (symmetric pad), matching the module.
    """
    lp = l_in // 2
    pad = (k - 1) // 2
    a = np.zeros((k * lp, l_in), np.float32)
    for t in range(k):
        for l in range(lp):
            s = l + t - pad
            if 0 <= s < lp:
                a[t * lp + l, 2 * s] = 0.5
                a[t * lp + l, 2 * s + 1] = 0.5
    return a


def _pool_matrix(l_in):
    lp = l_in // 2
    p = np.zeros((lp, l_in), np.float32)
    for l in range(lp):
        p[l, 2 * l] = 0.5
        p[l, 2 * l + 1] = 0.5
    return p


def _pack_weight_blockdiag(w, bb, dt):
    """w: [K, Cin, Cout] -> [K*bb*Cin, bb*Cout], block-diagonal over the lane-folded
    sub-batch:  Wbd[t*bb*Cin + b*Cin + c, b*Cout + o] = w[t, c, o]."""
    k, ci, co = w.shape
    eye = jnp.eye(bb, dtype=jnp.float32)
    wb = jnp.einsum("tco,bd->tbcdo", w.astype(jnp.float32), eye)
    return wb.reshape(k * bb * ci, bb * co).astype(dt)


def _pick_sub_batch(b, cout):
    """Largest divisor of b with sub_batch*cout ~<= 128 lanes, keeping >=2 grid steps
    whenever b >= 2 so both v7x TensorCores get work."""
    target = max(1, 128 // max(cout, 1))
    divisors = [d for d in range(1, b + 1) if b % d == 0]
    cand = [d for d in divisors if d <= target] or [1]
    best = max(cand)
    if b >= 2 and b // best < 2:
        cand2 = [d for d in cand if b // d >= 2]
        if cand2:
            best = max(cand2)
    return best


# ----------------------------------------------------------------------------
# Pallas kernel + wrapper.
# ----------------------------------------------------------------------------
def cnn_support_set_encoder(x, params, *, matmul_dtype=jnp.bfloat16, sub_batch=None):
    """x: [B, L, input_size] -> [B, L_out, out_channels] (matches torch forward)."""
    B, L, Cin = x.shape
    w1, b1, w2, b2, w3, b3, w4, b4 = params
    Cout = w1.shape[2]
    K1, K2, K3, K4 = w1.shape[0], w2.shape[0], w3.shape[0], w4.shape[0]

    L1c = L - K1 + 1      # conv1 'valid' output length
    L2c = L1c // 2        # pool -> conv2 'same'
    L3c = L2c // 2        # pool -> conv3 'same'
    L4c = L3c // 2        # pool -> conv4 'same'
    L4 = L4c // 2         # final pool

    dt = jnp.dtype(matmul_dtype)

    if sub_batch is None:
        sub_batch = _pick_sub_batch(B, Cout)
    Bb = sub_batch
    assert B % Bb == 0, "sub_batch must divide batch"
    G = B // Bb
    nCi, nCo = Bb * Cin, Bb * Cout

    # Host-precomputed gather / pool matrices (exact in bf16: entries are 0, 0.5, 1).
    A1 = jnp.asarray(_tap_matrix_valid(L, K1), dt)
    A2 = jnp.asarray(_tap_matrix_pool_same(L1c, K2), dt)
    A3 = jnp.asarray(_tap_matrix_pool_same(L2c, K3), dt)
    A4 = jnp.asarray(_tap_matrix_pool_same(L3c, K4), dt)
    Pm = jnp.asarray(_pool_matrix(L4c), dt)

    # Block-diagonally packed conv weights / lane-tiled biases (sub-batch on lanes).
    Wp1 = _pack_weight_blockdiag(w1, Bb, dt)
    Wp2 = _pack_weight_blockdiag(w2, Bb, dt)
    Wp3 = _pack_weight_blockdiag(w3, Bb, dt)
    Wp4 = _pack_weight_blockdiag(w4, Bb, dt)
    b1f = jnp.tile(b1.reshape(1, Cout).astype(jnp.float32), (1, Bb))
    b2f = jnp.tile(b2.reshape(1, Cout).astype(jnp.float32), (1, Bb))
    b3f = jnp.tile(b3.reshape(1, Cout).astype(jnp.float32), (1, Bb))
    b4f = jnp.tile(b4.reshape(1, Cout).astype(jnp.float32), (1, Bb))

    def _encoder_kernel(x_ref,
                        a1_ref, w1_ref, bb1_ref,
                        a2_ref, w2_ref, bb2_ref,
                        a3_ref, w3_ref, bb3_ref,
                        a4_ref, w4_ref, bb4_ref,
                        p_ref, o_ref):
        h = x_ref[0].astype(dt)                       # [L, Bb*Cin]

        def layer(h, a_ref, w_ref, bias_ref, k_sz, lc):
            # One MXU matmul gathers all taps of (pool of prev layer + zero pad)
            # for the whole sub-batch at once (batch folded onto lanes).
            g = jnp.dot(a_ref[...], h, preferred_element_type=jnp.float32)
            g = g.astype(dt)                          # [k_sz*lc, Bb*C_in]
            # im2col: lc is a multiple of 8 -> sublane-aligned static slices.
            patches = jnp.concatenate(
                [g[t * lc:(t + 1) * lc, :] for t in range(k_sz)], axis=1)
            # Single block-diagonal weight matmul for the whole sub-batch.
            out = jnp.dot(patches, w_ref[...],
                          preferred_element_type=jnp.float32) + bias_ref[...]
            return jnp.maximum(out, 0.0).astype(dt)   # bias/ReLU in f32, store in dt

        h = layer(h, a1_ref, w1_ref, bb1_ref, K1, L1c)
        h = layer(h, a2_ref, w2_ref, bb2_ref, K2, L2c)
        h = layer(h, a3_ref, w3_ref, bb3_ref, K3, L3c)
        h = layer(h, a4_ref, w4_ref, bb4_ref, K4, L4c)

        # Final avg_pool1d(2): one matmul for the whole sub-batch, lane-dense store.
        o_ref[0] = jnp.dot(p_ref[...], h,
                           preferred_element_type=jnp.float32).astype(o_ref.dtype)

    consts = (A1, Wp1, b1f, A2, Wp2, b2f, A3, Wp3, b3f, A4, Wp4, b4f, Pm)

    def _const_spec(arr):
        nd = arr.ndim
        return pl.BlockSpec(arr.shape, lambda i, _n=nd: (0,) * _n)

    # Advisory cost estimate (helps XLA overlap the kernel with surrounding ops).
    def _mm(m, k, n):
        return 2 * m * k * n
    gather_flops = B * (_mm(K1 * L1c, L, Cin) + _mm(K2 * L2c, L1c, Cout) +
                        _mm(K3 * L3c, L2c, Cout) + _mm(K4 * L4c, L3c, Cout))
    weight_flops = B * Bb * (_mm(L1c, K1 * Cin, Cout) + _mm(L2c, K2 * Cout, Cout) +
                             _mm(L3c, K3 * Cout, Cout) + _mm(L4c, K4 * Cout, Cout))
    pool_flops = B * _mm(L4, L4c, Cout)
    bytes_accessed = (
        int(B * L * Cin) * jnp.dtype(x.dtype).itemsize +
        int(B * L4 * Cout) * jnp.dtype(x.dtype).itemsize +
        sum(int(c.size) * jnp.dtype(c.dtype).itemsize for c in consts))
    cost = pl.CostEstimate(flops=int(gather_flops + weight_flops + pool_flops),
                           transcendentals=0, bytes_accessed=int(bytes_accessed))

    # Wrapper-side layout plumbing: fold the sub-batch onto the lane axis.
    x_r = x.reshape(G, Bb, L, Cin).transpose(0, 2, 1, 3).reshape(G, L, nCi)

    out_r = pl.pallas_call(
        _encoder_kernel,
        out_shape=jax.ShapeDtypeStruct((G, L4, nCo), x.dtype),
        grid=(G,),
        in_specs=[pl.BlockSpec((1, L, nCi), lambda i: (i, 0, 0))]
                 + [_const_spec(c) for c in consts],
        out_specs=pl.BlockSpec((1, L4, nCo), lambda i: (i, 0, 0)),
        compiler_params=pltpu.CompilerParams(dimension_semantics=("parallel",)),
        cost_estimate=cost,
    )(x_r, *consts)

    return out_r.reshape(G, L4, Bb, Cout).transpose(0, 2, 1, 3).reshape(B, L4, Cout)


# ----------------------------------------------------------------------------
# Pure-JAX reference mirroring the PyTorch module (NCW conv layout).
# ----------------------------------------------------------------------------
def reference_forward(x, params):
    w1, b1, w2, b2, w3, b3, w4, b4 = params
    h = jnp.transpose(x, (0, 2, 1))  # [B, C, L]  (torch permute(0, 2, 1))

    def conv(h, w_kio, b, pad):
        w = jnp.transpose(w_kio, (2, 1, 0))  # [Cout, Cin, K]
        out = jax.lax.conv_general_dilated(
            h, w, window_strides=(1,), padding=pad,
            dimension_numbers=("NCH", "OIH", "NCH"))
        return out + b.reshape(1, -1, 1)

    def pool(h):
        B, C, L = h.shape
        return h[..., : (L // 2) * 2].reshape(B, C, L // 2, 2).mean(-1)

    h = pool(jax.nn.relu(conv(h, w1, b1, "VALID")))
    h = pool(jax.nn.relu(conv(h, w2, b2, [(2, 2)])))
    h = pool(jax.nn.relu(conv(h, w3, b3, [(1, 1)])))
    h = pool(jax.nn.relu(conv(h, w4, b4, [(1, 1)])))
    return jnp.transpose(h, (0, 2, 1))


if __name__ == "__main__":
    B, L, Cin, Cout = 4, 68, 4, 32  # 68 -> 64 -> 32 -> 16 -> 8 -> 4 time steps
    key = jax.random.PRNGKey(0)
    ks = jax.random.split(key, 5)

    def init_conv(k, K, cin, cout):
        # Deterministic init matching torch Conv1d's default uniform bounds.
        kw, kb = jax.random.split(k)
        bound = 1.0 / np.sqrt(cin * K)
        w = jax.random.uniform(kw, (K, cin, cout), jnp.float32, -bound, bound)
        b = jax.random.uniform(kb, (1, cout), jnp.float32, -bound, bound)
        return w, b

    w1, b1 = init_conv(ks[0], 5, Cin, Cout)
    w2, b2 = init_conv(ks[1], 5, Cout, Cout)
    w3, b3 = init_conv(ks[2], 3, Cout, Cout)
    w4, b4 = init_conv(ks[3], 3, Cout, Cout)
    params = (w1, b1, w2, b2, w3, b3, w4, b4)

    x = jax.random.normal(ks[4], (B, L, Cin), jnp.float32)  # supps.sequences

    ref = jax.block_until_ready(reference_forward(x, params))

    # f32 matmul path: tight check against the reference.
    out_f32 = jax.block_until_ready(
        cnn_support_set_encoder(x, params, matmul_dtype=jnp.float32))
    np.testing.assert_allclose(np.asarray(out_f32), np.asarray(ref),
                               rtol=1e-5, atol=1e-5)

    # bf16-operand path (v6e/v7x MXU fast path, f32 accumulation): loose check.
    out_bf16 = jax.block_until_ready(
        cnn_support_set_encoder(x, params, matmul_dtype=jnp.bfloat16))
    np.testing.assert_allclose(np.asarray(out_bf16), np.asarray(ref),
                               rtol=5e-2, atol=5e-2)

    assert out_f32.shape == (B, (((L - 4) // 2) // 2 // 2) // 2, Cout)
    print("KERNEL_OK")
</pallas_src>

<mosaic_0001>
module attributes {stable_mosaic.version = 11 : i64} {
  func.func @_encoder_kernel(%arg0: i32, %arg1: memref<1x68x8xf32, #tpu.memory_space<vmem>>, %arg2: memref<320x68xf32, #tpu.memory_space<vmem>>, %arg3: memref<40x64xf32, #tpu.memory_space<vmem>>, %arg4: memref<1x64xf32, #tpu.memory_space<vmem>>, %arg5: memref<160x64xf32, #tpu.memory_space<vmem>>, %arg6: memref<320x64xf32, #tpu.memory_space<vmem>>, %arg7: memref<1x64xf32, #tpu.memory_space<vmem>>, %arg8: memref<48x32xf32, #tpu.memory_space<vmem>>, %arg9: memref<192x64xf32, #tpu.memory_space<vmem>>, %arg10: memref<1x64xf32, #tpu.memory_space<vmem>>, %arg11: memref<24x16xf32, #tpu.memory_space<vmem>>, %arg12: memref<192x64xf32, #tpu.memory_space<vmem>>, %arg13: memref<1x64xf32, #tpu.memory_space<vmem>>, %arg14: memref<4x8xf32, #tpu.memory_space<vmem>>, %arg15: memref<1x4x64xf32, #tpu.memory_space<vmem>>) attributes {dimension_semantics = [#tpu.dimension_semantics<parallel>], iteration_bounds = array<i64: 2>, scalar_prefetch = 0 : i64, scratch_operands = 0 : i64, tpu.core_type = #tpu.core_type<tc>, window_params = [{transform_indices = @transform_0, window_bounds = array<i64: 1, 68, 8>}, {pipeline_mode = #tpu.pipeline_mode<synchronous>, transform_indices = @transform_1, window_bounds = array<i64: 320, 68>}, {pipeline_mode = #tpu.pipeline_mode<synchronous>, transform_indices = @transform_2, window_bounds = array<i64: 40, 64>}, {pipeline_mode = #tpu.pipeline_mode<synchronous>, transform_indices = @transform_3, window_bounds = array<i64: 1, 64>}, {pipeline_mode = #tpu.pipeline_mode<synchronous>, transform_indices = @transform_4, window_bounds = array<i64: 160, 64>}, {pipeline_mode = #tpu.pipeline_mode<synchronous>, transform_indices = @transform_5, window_bounds = array<i64: 320, 64>}, {pipeline_mode = #tpu.pipeline_mode<synchronous>, transform_indices = @transform_6, window_bounds = array<i64: 1, 64>}, {pipeline_mode = #tpu.pipeline_mode<synchronous>, transform_indices = @transform_7, window_bounds = array<i64: 48, 32>}, {pipeline_mode = #tpu.pipeline_mode<synchronous>, transform_indices = @transform_8, window_bounds = array<i64: 192, 64>}, {pipeline_mode = #tpu.pipeline_mode<synchronous>, transform_indices = @transform_9, window_bounds = array<i64: 1, 64>}, {pipeline_mode = #tpu.pipeline_mode<synchronous>, transform_indices = @transform_10, window_bounds = array<i64: 24, 16>}, {pipeline_mode = #tpu.pipeline_mode<synchronous>, transform_indices = @transform_11, window_bounds = array<i64: 192, 64>}, {pipeline_mode = #tpu.pipeline_mode<synchronous>, transform_indices = @transform_12, window_bounds = array<i64: 1, 64>}, {pipeline_mode = #tpu.pipeline_mode<synchronous>, transform_indices = @transform_13, window_bounds = array<i64: 4, 8>}, {transform_indices = @transform_14, window_bounds = array<i64: 1, 4, 64>}]} {
    %c0 = arith.constant 0 : index
    %c0_0 = arith.constant 0 : index
    %c0_1 = arith.constant 0 : index
    %0 = vector.load %arg1[%c0, %c0_0, %c0_1] : memref<1x68x8xf32, #tpu.memory_space<vmem>>, vector<1x68x8xf32>
    %1 = vector.shape_cast %0 : vector<1x68x8xf32> to vector<68x8xf32>
    %c0_2 = arith.constant 0 : index
    %c0_3 = arith.constant 0 : index
    %2 = vector.load %arg2[%c0_2, %c0_3] : memref<320x68xf32, #tpu.memory_space<vmem>>, vector<320x68xf32>
    %cst = arith.constant dense<0.000000e+00> : vector<320x8xf32>
    %3 = tpu.matmul %2, %1, %cst {dimension_numbers = #tpu.dot_dimension_numbers<[1], [0], [0], [1], [0, 0, 1, 1], [], []>} : vector<320x68xf32>, vector<68x8xf32>, vector<320x8xf32> -> vector<320x8xf32>
    %4 = vector.extract_strided_slice %3 {offsets = [0, 0], sizes = [64, 8], strides = [1, 1]} : vector<320x8xf32> to vector<64x8xf32>
    %5 = vector.extract_strided_slice %3 {offsets = [64, 0], sizes = [64, 8], strides = [1, 1]} : vector<320x8xf32> to vector<64x8xf32>
    %6 = vector.extract_strided_slice %3 {offsets = [128, 0], sizes = [64, 8], strides = [1, 1]} : vector<320x8xf32> to vector<64x8xf32>
    %7 = vector.extract_strided_slice %3 {offsets = [192, 0], sizes = [64, 8], strides = [1, 1]} : vector<320x8xf32> to vector<64x8xf32>
    %8 = vector.extract_strided_slice %3 {offsets = [256, 0], sizes = [64, 8], strides = [1, 1]} : vector<320x8xf32> to vector<64x8xf32>
    %9 = tpu.concatenate %4, %5, %6, %7, %8 in 1 : vector<64x8xf32>, vector<64x8xf32>, vector<64x8xf32>, vector<64x8xf32>, vector<64x8xf32> -> vector<64x40xf32>
    %c0_4 = arith.constant 0 : index
    %c0_5 = arith.constant 0 : index
    %10 = vector.load %arg3[%c0_4, %c0_5] : memref<40x64xf32, #tpu.memory_space<vmem>>, vector<40x64xf32>
    %cst_6 = arith.constant dense<0.000000e+00> : vector<64x64xf32>
    %11 = tpu.matmul %9, %10, %cst_6 {dimension_numbers = #tpu.dot_dimension_numbers<[1], [0], [0], [1], [0, 0, 1, 1], [], []>} : vector<64x40xf32>, vector<40x64xf32>, vector<64x64xf32> -> vector<64x64xf32>
    %c0_7 = arith.constant 0 : index
    %c0_8 = arith.constant 0 : index
    %12 = vector.load %arg4[%c0_7, %c0_8] : memref<1x64xf32, #tpu.memory_space<vmem>>, vector<1x64xf32>
    %13 = vector.broadcast %12 : vector<1x64xf32> to vector<64x64xf32>
    %14 = arith.addf %11, %13 : vector<64x64xf32>
    %cst_9 = arith.constant 0.000000e+00 : f32
    %15 = vector.broadcast %cst_9 : f32 to vector<64x64xf32>
    %16 = arith.maximumf %14, %15 : vector<64x64xf32>
    %c0_10 = arith.constant 0 : index
    %c0_11 = arith.constant 0 : index
    %17 = vector.load %arg5[%c0_10, %c0_11] : memref<160x64xf32, #tpu.memory_space<vmem>>, vector<160x64xf32>
    %cst_12 = arith.constant dense<0.000000e+00> : vector<160x64xf32>
    %18 = tpu.matmul %17, %16, %cst_12 {dimension_numbers = #tpu.dot_dimension_numbers<[1], [0], [0], [1], [0, 0, 1, 1], [], []>} : vector<160x64xf32>, vector<64x64xf32>, vector<160x64xf32> -> vector<160x64xf32>
    %19 = vector.extract_strided_slice %18 {offsets = [0, 0], sizes = [32, 64], strides = [1, 1]} : vector<160x64xf32> to vector<32x64xf32>
    %20 = vector.extract_strided_slice %18 {offsets = [32, 0], sizes = [32, 64], strides = [1, 1]} : vector<160x64xf32> to vector<32x64xf32>
    %21 = vector.extract_strided_slice %18 {offsets = [64, 0], sizes = [32, 64], strides = [1, 1]} : vector<160x64xf32> to vector<32x64xf32>
    %22 = vector.extract_strided_slice %18 {offsets = [96, 0], sizes = [32, 64], strides = [1, 1]} : vector<160x64xf32> to vector<32x64xf32>
    %23 = vector.extract_strided_slice %18 {offsets = [128, 0], sizes = [32, 64], strides = [1, 1]} : vector<160x64xf32> to vector<32x64xf32>
    %24 = tpu.concatenate %19, %20, %21, %22, %23 in 1 : vector<32x64xf32>, vector<32x64xf32>, vector<32x64xf32>, vector<32x64xf32>, vector<32x64xf32> -> vector<32x320xf32>
    %c0_13 = arith.constant 0 : index
    %c0_14 = arith.constant 0 : index
    %25 = vector.load %arg6[%c0_13, %c0_14] : memref<320x64xf32, #tpu.memory_space<vmem>>, vector<320x64xf32>
    %cst_15 = arith.constant dense<0.000000e+00> : vector<32x64xf32>
    %26 = tpu.matmul %24, %25, %cst_15 {dimension_numbers = #tpu.dot_dimension_numbers<[1], [0], [0], [1], [0, 0, 1, 1], [], []>} : vector<32x320xf32>, vector<320x64xf32>, vector<32x64xf32> -> vector<32x64xf32>
    %c0_16 = arith.constant 0 : index
    %c0_17 = arith.constant 0 : index
    %27 = vector.load %arg7[%c0_16, %c0_17] : memref<1x64xf32, #tpu.memory_space<vmem>>, vector<1x64xf32>
    %28 = vector.broadcast %27 : vector<1x64xf32> to vector<32x64xf32>
    %29 = arith.addf %26, %28 : vector<32x64xf32>
    %cst_18 = arith.constant 0.000000e+00 : f32
    %30 = vector.broadcast %cst_18 : f32 to vector<32x64xf32>
    %31 = arith.maximumf %29, %30 : vector<32x64xf32>
    %c0_19 = arith.constant 0 : index
    %c0_20 = arith.constant 0 : index
    %32 = vector.load %arg8[%c0_19, %c0_20] : memref<48x32xf32, #tpu.memory_space<vmem>>, vector<48x32xf32>
    %cst_21 = arith.constant dense<0.000000e+00> : vector<48x64xf32>
    %33 = tpu.matmul %32, %31, %cst_21 {dimension_numbers = #tpu.dot_dimension_numbers<[1], [0], [0], [1], [0, 0, 1, 1], [], []>} : vector<48x32xf32>, vector<32x64xf32>, vector<48x64xf32> -> vector<48x64xf32>
    %34 = vector.extract_strided_slice %33 {offsets = [0, 0], sizes = [16, 64], strides = [1, 1]} : vector<48x64xf32> to vector<16x64xf32>
    %35 = vector.extract_strided_slice %33 {offsets = [16, 0], sizes = [16, 64], strides = [1, 1]} : vector<48x64xf32> to vector<16x64xf32>
    %36 = vector.extract_strided_slice %33 {offsets = [32, 0], sizes = [16, 64], strides = [1, 1]} : vector<48x64xf32> to vector<16x64xf32>
    %37 = tpu.concatenate %34, %35, %36 in 1 : vector<16x64xf32>, vector<16x64xf32>, vector<16x64xf32> -> vector<16x192xf32>
    %c0_22 = arith.constant 0 : index
    %c0_23 = arith.constant 0 : index
    %38 = vector.load %arg9[%c0_22, %c0_23] : memref<192x64xf32, #tpu.memory_space<vmem>>, vector<192x64xf32>
    %cst_24 = arith.constant dense<0.000000e+00> : vector<16x64xf32>
    %39 = tpu.matmul %37, %38, %cst_24 {dimension_numbers = #tpu.dot_dimension_numbers<[1], [0], [0], [1], [0, 0, 1, 1], [], []>} : vector<16x192xf32>, vector<192x64xf32>, vector<16x64xf32> -> vector<16x64xf32>
    %c0_25 = arith.constant 0 : index
    %c0_26 = arith.constant 0 : index
    %40 = vector.load %arg10[%c0_25, %c0_26] : memref<1x64xf32, #tpu.memory_space<vmem>>, vector<1x64xf32>
    %41 = vector.broadcast %40 : vector<1x64xf32> to vector<16x64xf32>
    %42 = arith.addf %39, %41 : vector<16x64xf32>
    %cst_27 = arith.constant 0.000000e+00 : f32
    %43 = vector.broadcast %cst_27 : f32 to vector<16x64xf32>
    %44 = arith.maximumf %42, %43 : vector<16x64xf32>
    %c0_28 = arith.constant 0 : index
    %c0_29 = arith.constant 0 : index
    %45 = vector.load %arg11[%c0_28, %c0_29] : memref<24x16xf32, #tpu.memory_space<vmem>>, vector<24x16xf32>
    %cst_30 = arith.constant dense<0.000000e+00> : vector<24x64xf32>
    %46 = tpu.matmul %45, %44, %cst_30 {dimension_numbers = #tpu.dot_dimension_numbers<[1], [0], [0], [1], [0, 0, 1, 1], [], []>} : vector<24x16xf32>, vector<16x64xf32>, vector<24x64xf32> -> vector<24x64xf32>
    %47 = vector.extract_strided_slice %46 {offsets = [0, 0], sizes = [8, 64], strides = [1, 1]} : vector<24x64xf32> to vector<8x64xf32>
    %48 = vector.extract_strided_slice %46 {offsets = [8, 0], sizes = [8, 64], strides = [1, 1]} : vector<24x64xf32> to vector<8x64xf32>
    %49 = vector.extract_strided_slice %46 {offsets = [16, 0], sizes = [8, 64], strides = [1, 1]} : vector<24x64xf32> to vector<8x64xf32>
    %50 = tpu.concatenate %47, %48, %49 in 1 : vector<8x64xf32>, vector<8x64xf32>, vector<8x64xf32> -> vector<8x192xf32>
    %c0_31 = arith.constant 0 : index
    %c0_32 = arith.constant 0 : index
    %51 = vector.load %arg12[%c0_31, %c0_32] : memref<192x64xf32, #tpu.memory_space<vmem>>, vector<192x64xf32>
    %cst_33 = arith.constant dense<0.000000e+00> : vector<8x64xf32>
    %52 = tpu.matmul %50, %51, %cst_33 {dimension_numbers = #tpu.dot_dimension_numbers<[1], [0], [0], [1], [0, 0, 1, 1], [], []>} : vector<8x192xf32>, vector<192x64xf32>, vector<8x64xf32> -> vector<8x64xf32>
    %c0_34 = arith.constant 0 : index
    %c0_35 = arith.constant 0 : index
    %53 = vector.load %arg13[%c0_34, %c0_35] : memref<1x64xf32, #tpu.memory_space<vmem>>, vector<1x64xf32>
    %54 = vector.broadcast %53 : vector<1x64xf32> to vector<8x64xf32>
    %55 = arith.addf %52, %54 : vector<8x64xf32>
    %cst_36 = arith.constant 0.000000e+00 : f32
    %56 = vector.broadcast %cst_36 : f32 to vector<8x64xf32>
    %57 = arith.maximumf %55, %56 : vector<8x64xf32>
    %c0_37 = arith.constant 0 : index
    %c0_38 = arith.constant 0 : index
    %58 = vector.load %arg14[%c0_37, %c0_38] : memref<4x8xf32, #tpu.memory_space<vmem>>, vector<4x8xf32>
    %cst_39 = arith.constant dense<0.000000e+00> : vector<4x64xf32>
    %59 = tpu.matmul %58, %57, %cst_39 {dimension_numbers = #tpu.dot_dimension_numbers<[1], [0], [0], [1], [0, 0, 1, 1], [], []>} : vector<4x8xf32>, vector<8x64xf32>, vector<4x64xf32> -> vector<4x64xf32>
    %c0_40 = arith.constant 0 : index
    %c0_41 = arith.constant 0 : index
    %c0_42 = arith.constant 0 : index
    %60 = vector.load %arg15[%c0_40, %c0_41, %c0_42] : memref<1x4x64xf32, #tpu.memory_space<vmem>>, vector<1x4x64xf32>
    %61 = vector.shape_cast %60 : vector<1x4x64xf32> to vector<4x64xf32>
    %62 = vector.shape_cast %59 : vector<4x64xf32> to vector<1x4x64xf32>
    tpu.vector_store %arg15[%c0_40, %c0_41, %c0_42], %62 {strides = array<i32>} : memref<1x4x64xf32, #tpu.memory_space<vmem>>, vector<1x4x64xf32>,
    return
  }
  func.func @transform_0(%arg0: i32) -> (i32, i32, i32) {
    %c0_i32 = arith.constant 0 : i32
    %c0_i32_0 = arith.constant 0 : i32
    %c0_i32_1 = arith.constant 0 : i32
    return %arg0, %c0_i32, %c0_i32_0 : i32, i32, i32
  }
  func.func @transform_1(%arg0: i32) -> (i32, i32) {
    %c0_i32 = arith.constant 0 : i32
    %c0_i32_0 = arith.constant 0 : i32
    %c0_i32_1 = arith.constant 0 : i32
    return %c0_i32, %c0_i32_0 : i32, i32
  }
  func.func @transform_2(%arg0: i32) -> (i32, i32) {
    %c0_i32 = arith.constant 0 : i32
    %c0_i32_0 = arith.constant 0 : i32
    %c0_i32_1 = arith.constant 0 : i32
    return %c0_i32, %c0_i32_0 : i32, i32
  }
  func.func @transform_3(%arg0: i32) -> (i32, i32) {
    %c0_i32 = arith.constant 0 : i32
    %c0_i32_0 = arith.constant 0 : i32
    %c0_i32_1 = arith.constant 0 : i32
    return %c0_i32, %c0_i32_0 : i32, i32
  }
  func.func @transform_4(%arg0: i32) -> (i32, i32) {
    %c0_i32 = arith.constant 0 : i32
    %c0_i32_0 = arith.constant 0 : i32
    %c0_i32_1 = arith.constant 0 : i32
    return %c0_i32, %c0_i32_0 : i32, i32
  }
  func.func @transform_5(%arg0: i32) -> (i32, i32) {
    %c0_i32 = arith.constant 0 : i32
    %c0_i32_0 = arith.constant 0 : i32
    %c0_i32_1 = arith.constant 0 : i32
    return %c0_i32, %c0_i32_0 : i32, i32
  }
  func.func @transform_6(%arg0: i32) -> (i32, i32) {
    %c0_i32 = arith.constant 0 : i32
    %c0_i32_0 = arith.constant 0 : i32
    %c0_i32_1 = arith.constant 0 : i32
    return %c0_i32, %c0_i32_0 : i32, i32
  }
  func.func @transform_7(%arg0: i32) -> (i32, i32) {
    %c0_i32 = arith.constant 0 : i32
    %c0_i32_0 = arith.constant 0 : i32
    %c0_i32_1 = arith.constant 0 : i32
    return %c0_i32, %c0_i32_0 : i32, i32
  }
  func.func @transform_8(%arg0: i32) -> (i32, i32) {
    %c0_i32 = arith.constant 0 : i32
    %c0_i32_0 = arith.constant 0 : i32
    %c0_i32_1 = arith.constant 0 : i32
    return %c0_i32, %c0_i32_0 : i32, i32
  }
  func.func @transform_9(%arg0: i32) -> (i32, i32) {
    %c0_i32 = arith.constant 0 : i32
    %c0_i32_0 = arith.constant 0 : i32
    %c0_i32_1 = arith.constant 0 : i32
    return %c0_i32, %c0_i32_0 : i32, i32
  }
  func.func @transform_10(%arg0: i32) -> (i32, i32) {
    %c0_i32 = arith.constant 0 : i32
    %c0_i32_0 = arith.constant 0 : i32
    %c0_i32_1 = arith.constant 0 : i32
    return %c0_i32, %c0_i32_0 : i32, i32
  }
  func.func @transform_11(%arg0: i32) -> (i32, i32) {
    %c0_i32 = arith.constant 0 : i32
    %c0_i32_0 = arith.constant 0 : i32
    %c0_i32_1 = arith.constant 0 : i32
    return %c0_i32, %c0_i32_0 : i32, i32
  }
  func.func @transform_12(%arg0: i32) -> (i32, i32) {
    %c0_i32 = arith.constant 0 : i32
    %c0_i32_0 = arith.constant 0 : i32
    %c0_i32_1 = arith.constant 0 : i32
    return %c0_i32, %c0_i32_0 : i32, i32
  }
  func.func @transform_13(%arg0: i32) -> (i32, i32) {
    %c0_i32 = arith.constant 0 : i32
    %c0_i32_0 = arith.constant 0 : i32
    %c0_i32_1 = arith.constant 0 : i32
    return %c0_i32, %c0_i32_0 : i32, i32
  }
  func.func @transform_14(%arg0: i32) -> (i32, i32, i32) {
    %c0_i32 = arith.constant 0 : i32
    %c0_i32_0 = arith.constant 0 : i32
    %c0_i32_1 = arith.constant 0 : i32
    return %arg0, %c0_i32, %c0_i32_0 : i32, i32, i32
  }
}

</mosaic_0001>

<llo_original>
// kernel: tpu_custom_call.1
$region0: #{tpu_custom_call.1}
  #allocation0 [shape = 'u32[]', space=smem, size = 0x4, offset = 0x4, fixed_abs, tag = 'smem constant byte address 0x4 - core index']
  #allocation1 [shape = 'u32[72,128]{1,0:T(1,128)}', space=vmem, size = 0x9000, scoped, tag = 'internal scratch']
  %s0 = inlined_call_operand.vmem [shape: f32[2,68,8], index: 0, kind: input, shape index: {}]
  %s1 = inlined_call_operand.vmem [shape: f32[320,68], index: 1, kind: input, shape index: {}]
  %s2 = inlined_call_operand.vmem [shape: f32[40,64], index: 2, kind: input, shape index: {}]
  %s3 = inlined_call_operand.vmem [shape: f32[1,64], index: 3, kind: input, shape index: {}]
  %s4 = inlined_call_operand.vmem [shape: f32[160,64], index: 4, kind: input, shape index: {}]
  %s5 = inlined_call_operand.vmem [shape: f32[320,64], index: 5, kind: input, shape index: {}]
  %s6 = inlined_call_operand.vmem [shape: f32[1,64], index: 6, kind: input, shape index: {}]
  %s7 = inlined_call_operand.vmem [shape: f32[48,32], index: 7, kind: input, shape index: {}]
  %s8 = inlined_call_operand.vmem [shape: f32[192,64], index: 8, kind: input, shape index: {}]
  %s9 = inlined_call_operand.vmem [shape: f32[1,64], index: 9, kind: input, shape index: {}]
  %s10 = inlined_call_operand.vmem [shape: f32[24,16], index: 10, kind: input, shape index: {}]
  %s11 = inlined_call_operand.vmem [shape: f32[192,64], index: 11, kind: input, shape index: {}]
  %s12 = inlined_call_operand.vmem [shape: f32[1,64], index: 12, kind: input, shape index: {}]
  %s13 = inlined_call_operand.vmem [shape: f32[4,8], index: 13, kind: input, shape index: {}]
  %s14 = inlined_call_operand.hbm [shape: f32[2,4,64], index: 14, kind: output, shape index: {}]
  %s15 = sld [smem:[#allocation0]]
  $region89: #{tpu_custom_call.1} parent=0
    _
  %s17 = ssub.s32 1, %s15
  %s18 = scalar_select 0, %s17, %s15
  $region1: #{tpu_custom_call.1} parent=0
    #allocation2 [shape = 'u8[4096]{0}', space=vmem, size = 0x1000, scoped, tag = 'output window, operand 0']
    #allocation3 [shape = 's32[2]{0}', space=sflag, size = 0x8, scoped, tag = 'scoped memory for tpu_custom_call.1']
    %19 = vsyncpa [#allocation3], 0
    %s20 = scalar_lea.sflag [#allocation3], 1
    %21 = vsyncpa %s20, 0
    loop: start=0, step=1, limit=4
    $region2: #{tpu_custom_call.1} parent=1 // loop_pre_header
      _
    $region3: #{tpu_custom_call.1} parent=1 // loop_header
      %s23 = sphi 0, %s27
      %p24 = scmp.ge.s32.totalorder %s23, 4
      %s33 = sphi 0, %s35
      %s36 = sphi 0, %s33
      %s37 = sphi 0, %s36
      %s53 = sphi 0, %s37
      %s57 = sphi 0, %s57
      %s59 = sphi 0, %s57
      %s60 = sphi 0, %s59
      %s74 = sphi 0, %s60
      %s78 = sphi 0, %s78
      %s80 = sphi 0, %s78
      %s81 = sphi 0, %s80
      %s95 = sphi 0, %s81
      %s99 = sphi 0, %s99
      %s101 = sphi 0, %s99
      %s102 = sphi 0, %s101
      %s116 = sphi 0, %s102
      %s120 = sphi 0, %s120
      %s122 = sphi 0, %s120
      %s123 = sphi 0, %s122
      %s137 = sphi 0, %s123
      %s141 = sphi 0, %s141
      %s143 = sphi 0, %s141
      %s144 = sphi 0, %s143
      %s158 = sphi 0, %s144
      %s162 = sphi 0, %s162
      %s164 = sphi 0, %s162
      %s165 = sphi 0, %s164
      %s179 = sphi 0, %s165
      %s183 = sphi 0, %s183
      %s185 = sphi 0, %s183
      %s186 = sphi 0, %s185
      %s200 = sphi 0, %s186
      %s204 = sphi 0, %s204
      %s206 = sphi 0, %s204
      %s207 = sphi 0, %s206
      %s221 = sphi 0, %s207
      %s225 = sphi 0, %s225
      %s227 = sphi 0, %s225
      %s228 = sphi 0, %s227
      %s242 = sphi 0, %s228
      %s246 = sphi 0, %s246
      %s248 = sphi 0, %s246
      %s249 = sphi 0, %s248
      %s263 = sphi 0, %s249
      %s267 = sphi 0, %s267
      %s269 = sphi 0, %s267
      %s270 = sphi 0, %s269
      %s284 = sphi 0, %s270
      %s288 = sphi 0, %s288
      %s290 = sphi 0, %s288
      %s291 = sphi 0, %s290
      %s305 = sphi 0, %s291
      %s309 = sphi 0, %s309
      %s311 = sphi 0, %s309
      %s312 = sphi 0, %s311
      %s326 = sphi 0, %s312
      %s332 = sphi 0, %s334
      %s335 = sphi 0, %s332
      %s336 = sphi 0, %s335
      %s352 = sphi 0, %s336
    $region4: #{tpu_custom_call.1} parent=1 // loop_header_branch
      %26 = sbr.rel (%p24) target = $region8
    $region5: #{tpu_custom_call.1} parent=1 // loop_body
      %s28 = ssub.s32 %s23, 1
      %s29 = ssub.s32 %s23, 2
      %s30 = sadd.s32 %s23, 1
      %s31 = ssub.s32 %s23, %s30
      %p32 = scmp.eq.s32.totalorder %s31, 0
      %s34 = sadd.s32 %s33, 1
      %s35 = scalar_select %p32, %s33, %s34
      %p38 = pneg %p32
      %p39 = scmp.eq.s32.totalorder %s23, 1
      %p40 = por %p38, %p39
      %p41 = scmp.ne.s32.totalorder %s33, %s36
      %p42 = scmp.eq.s32.totalorder %s23, 0
      %p43 = por %p41, %p42
      %p44 = scmp.ne.s32.totalorder %s33, %s36
      %p45 = scmp.eq.s32.totalorder %s28, 1
      %p46 = por %p44, %p45
      %p47 = scmp.ne.s32.totalorder %s36, %s37
      %p48 = scmp.eq.s32.totalorder %s28, 0
      %p49 = por %p47, %p48
      %p50 = scmp.ne.s32.totalorder %s36, %s37
      %p51 = scmp.eq.s32.totalorder %s29, 1
      %p52 = por %p50, %p51
      %p54 = scmp.ne.s32.totalorder %s37, %s53
      %p55 = scmp.eq.s32.totalorder %s29, 0
      %p56 = por %p54, %p55
      %s58 = sadd.s32 %s57, 1
      %p61 = scmp.eq.s32.totalorder %s23, 1
      %p62 = scmp.ne.s32.totalorder %s57, %s59
      %p63 = scmp.eq.s32.totalorder %s23, 0
      %p64 = por %p62, %p63
      %p65 = scmp.ne.s32.totalorder %s57, %s59
      %p66 = scmp.eq.s32.totalorder %s28, 1
      %p67 = por %p65, %p66
      %p68 = scmp.ne.s32.totalorder %s59, %s60
      %p69 = scmp.eq.s32.totalorder %s28, 0
      %p70 = por %p68, %p69
      %p71 = scmp.ne.s32.totalorder %s59, %s60
      %p72 = scmp.eq.s32.totalorder %s29, 1
      %p73 = por %p71, %p72
      %p75 = scmp.ne.s32.totalorder %s60, %s74
      %p76 = scmp.eq.s32.totalorder %s29, 0
      %p77 = por %p75, %p76
      %s79 = sadd.s32 %s78, 1
      %p82 = scmp.eq.s32.totalorder %s23, 1
      %p83 = scmp.ne.s32.totalorder %s78, %s80
      %p84 = scmp.eq.s32.totalorder %s23, 0
      %p85 = por %p83, %p84
      %p86 = scmp.ne.s32.totalorder %s78, %s80
      %p87 = scmp.eq.s32.totalorder %s28, 1
      %p88 = por %p86, %p87
      %p89 = scmp.ne.s32.totalorder %s80, %s81
      %p90 = scmp.eq.s32.totalorder %s28, 0
      %p91 = por %p89, %p90
      %p92 = scmp.ne.s32.totalorder %s80, %s81
      %p93 = scmp.eq.s32.totalorder %s29, 1
      %p94 = por %p92, %p93
      %p96 = scmp.ne.s32.totalorder %s81, %s95
      %p97 = scmp.eq.s32.totalorder %s29, 0
      %p98 = por %p96, %p97
      %s100 = sadd.s32 %s99, 1
      %p103 = scmp.eq.s32.totalorder %s23, 1
      %p104 = scmp.ne.s32.totalorder %s99, %s101
      %p105 = scmp.eq.s32.totalorder %s23, 0
      %p106 = por %p104, %p105
      %p107 = scmp.ne.s32.totalorder %s99, %s101
      %p108 = scmp.eq.s32.totalorder %s28, 1
      %p109 = por %p107, %p108
      %p110 = scmp.ne.s32.totalorder %s101, %s102
      %p111 = scmp.eq.s32.totalorder %s28, 0
      %p112 = por %p110, %p111
      %p113 = scmp.ne.s32.totalorder %s101, %s102
      %p114 = scmp.eq.s32.totalorder %s29, 1
      %p115 = por %p113, %p114
      %p117 = scmp.ne.s32.totalorder %s102, %s116
      %p118 = scmp.eq.s32.totalorder %s29, 0
      %p119 = por %p117, %p118
      %s121 = sadd.s32 %s120, 1
      %p124 = scmp.eq.s32.totalorder %s23, 1
      %p125 = scmp.ne.s32.totalorder %s120, %s122
      %p126 = scmp.eq.s32.totalorder %s23, 0
      %p127 = por %p125, %p126
      %p128 = scmp.ne.s32.totalorder %s120, %s122
      %p129 = scmp.eq.s32.totalorder %s28, 1
      %p130 = por %p128, %p129
      %p131 = scmp.ne.s32.totalorder %s122, %s123
      %p132 = scmp.eq.s32.totalorder %s28, 0
      %p133 = por %p131, %p132
      %p134 = scmp.ne.s32.totalorder %s122, %s123
      %p135 = scmp.eq.s32.totalorder %s29, 1
      %p136 = por %p134, %p135
      %p138 = scmp.ne.s32.totalorder %s123, %s137
      %p139 = scmp.eq.s32.totalorder %s29, 0
      %p140 = por %p138, %p139
      %s142 = sadd.s32 %s141, 1
      %p145 = scmp.eq.s32.totalorder %s23, 1
      %p146 = scmp.ne.s32.totalorder %s141, %s143
      %p147 = scmp.eq.s32.totalorder %s23, 0
      %p148 = por %p146, %p147
      %p149 = scmp.ne.s32.totalorder %s141, %s143
      %p150 = scmp.eq.s32.totalorder %s28, 1
      %p151 = por %p149, %p150
      %p152 = scmp.ne.s32.totalorder %s143, %s144
      %p153 = scmp.eq.s32.totalorder %s28, 0
      %p154 = por %p152, %p153
      %p155 = scmp.ne.s32.totalorder %s143, %s144
      %p156 = scmp.eq.s32.totalorder %s29, 1
      %p157 = por %p155, %p156
      %p159 = scmp.ne.s32.totalorder %s144, %s158
      %p160 = scmp.eq.s32.totalorder %s29, 0
      %p161 = por %p159, %p160
      %s163 = sadd.s32 %s162, 1
      %p166 = scmp.eq.s32.totalorder %s23, 1
      %p167 = scmp.ne.s32.totalorder %s162, %s164
      %p168 = scmp.eq.s32.totalorder %s23, 0
      %p169 = por %p167, %p168
      %p170 = scmp.ne.s32.totalorder %s162, %s164
      %p171 = scmp.eq.s32.totalorder %s28, 1
      %p172 = por %p170, %p171
      %p173 = scmp.ne.s32.totalorder %s164, %s165
      %p174 = scmp.eq.s32.totalorder %s28, 0
      %p175 = por %p173, %p174
      %p176 = scmp.ne.s32.totalorder %s164, %s165
      %p177 = scmp.eq.s32.totalorder %s29, 1
      %p178 = por %p176, %p177
      %p180 = scmp.ne.s32.totalorder %s165, %s179
      %p181 = scmp.eq.s32.totalorder %s29, 0
      %p182 = por %p180, %p181
      %s184 = sadd.s32 %s183, 1
      %p187 = scmp.eq.s32.totalorder %s23, 1
      %p188 = scmp.ne.s32.totalorder %s183, %s185
      %p189 = scmp.eq.s32.totalorder %s23, 0
      %p190 = por %p188, %p189
      %p191 = scmp.ne.s32.totalorder %s183, %s185
      %p192 = scmp.eq.s32.totalorder %s28, 1
      %p193 = por %p191, %p192
      %p194 = scmp.ne.s32.totalorder %s185, %s186
      %p195 = scmp.eq.s32.totalorder %s28, 0
      %p196 = por %p194, %p195
      %p197 = scmp.ne.s32.totalorder %s185, %s186
      %p198 = scmp.eq.s32.totalorder %s29, 1
      %p199 = por %p197, %p198
      %p201 = scmp.ne.s32.totalorder %s186, %s200
      %p202 = scmp.eq.s32.totalorder %s29, 0
      %p203 = por %p201, %p202
      %s205 = sadd.s32 %s204, 1
      %p208 = scmp.eq.s32.totalorder %s23, 1
      %p209 = scmp.ne.s32.totalorder %s204, %s206
      %p210 = scmp.eq.s32.totalorder %s23, 0
      %p211 = por %p209, %p210
      %p212 = scmp.ne.s32.totalorder %s204, %s206
      %p213 = scmp.eq.s32.totalorder %s28, 1
      %p214 = por %p212, %p213
      %p215 = scmp.ne.s32.totalorder %s206, %s207
      %p216 = scmp.eq.s32.totalorder %s28, 0
      %p217 = por %p215, %p216
      %p218 = scmp.ne.s32.totalorder %s206, %s207
      %p219 = scmp.eq.s32.totalorder %s29, 1
      %p220 = por %p218, %p219
      %p222 = scmp.ne.s32.totalorder %s207, %s221
      %p223 = scmp.eq.s32.totalorder %s29, 0
      %p224 = por %p222, %p223
      %s226 = sadd.s32 %s225, 1
      %p229 = scmp.eq.s32.totalorder %s23, 1
      %p230 = scmp.ne.s32.totalorder %s225, %s227
      %p231 = scmp.eq.s32.totalorder %s23, 0
      %p232 = por %p230, %p231
      %p233 = scmp.ne.s32.totalorder %s225, %s227
      %p234 = scmp.eq.s32.totalorder %s28, 1
      %p235 = por %p233, %p234
      %p236 = scmp.ne.s32.totalorder %s227, %s228
      %p237 = scmp.eq.s32.totalorder %s28, 0
      %p238 = por %p236, %p237
      %p239 = scmp.ne.s32.totalorder %s227, %s228
      %p240 = scmp.eq.s32.totalorder %s29, 1
      %p241 = por %p239, %p240
      %p243 = scmp.ne.s32.totalorder %s228, %s242
      %p244 = scmp.eq.s32.totalorder %s29, 0
      %p245 = por %p243, %p244
      %s247 = sadd.s32 %s246, 1
      %p250 = scmp.eq.s32.totalorder %s23, 1
      %p251 = scmp.ne.s32.totalorder %s246, %s248
      %p252 = scmp.eq.s32.totalorder %s23, 0
      %p253 = por %p251, %p252
      %p254 = scmp.ne.s32.totalorder %s246, %s248
      %p255 = scmp.eq.s32.totalorder %s28, 1
      %p256 = por %p254, %p255
      %p257 = scmp.ne.s32.totalorder %s248, %s249
      %p258 = scmp.eq.s32.totalorder %s28, 0
      %p259 = por %p257, %p258
      %p260 = scmp.ne.s32.totalorder %s248, %s249
      %p261 = scmp.eq.s32.totalorder %s29, 1
      %p262 = por %p260, %p261
      %p264 = scmp.ne.s32.totalorder %s249, %s263
      %p265 = scmp.eq.s32.totalorder %s29, 0
      %p266 = por %p264, %p265
      %s268 = sadd.s32 %s267, 1
      %p271 = scmp.eq.s32.totalorder %s23, 1
      %p272 = scmp.ne.s32.totalorder %s267, %s269
      %p273 = scmp.eq.s32.totalorder %s23, 0
      %p274 = por %p272, %p273
      %p275 = scmp.ne.s32.totalorder %s267, %s269
      %p276 = scmp.eq.s32.totalorder %s28, 1
      %p277 = por %p275, %p276
      %p278 = scmp.ne.s32.totalorder %s269, %s270
      %p279 = scmp.eq.s32.totalorder %s28, 0
      %p280 = por %p278, %p279
      %p281 = scmp.ne.s32.totalorder %s269, %s270
      %p282 = scmp.eq.s32.totalorder %s29, 1
      %p283 = por %p281, %p282
      %p285 = scmp.ne.s32.totalorder %s270, %s284
      %p286 = scmp.eq.s32.totalorder %s29, 0
      %p287 = por %p285, %p286
      %s289 = sadd.s32 %s288, 1
      %p292 = scmp.eq.s32.totalorder %s23, 1
      %p293 = scmp.ne.s32.totalorder %s288, %s290
      %p294 = scmp.eq.s32.totalorder %s23, 0
      %p295 = por %p293, %p294
      %p296 = scmp.ne.s32.totalorder %s288, %s290
      %p297 = scmp.eq.s32.totalorder %s28, 1
      %p298 = por %p296, %p297
      %p299 = scmp.ne.s32.totalorder %s290, %s291
      %p300 = scmp.eq.s32.totalorder %s28, 0
      %p301 = por %p299, %p300
      %p302 = scmp.ne.s32.totalorder %s290, %s291
      %p303 = scmp.eq.s32.totalorder %s29, 1
      %p304 = por %p302, %p303
      %p306 = scmp.ne.s32.totalorder %s291, %s305
      %p307 = scmp.eq.s32.totalorder %s29, 0
      %p308 = por %p306, %p307
      %s310 = sadd.s32 %s309, 1
      %p313 = scmp.eq.s32.totalorder %s23, 1
      %p314 = scmp.ne.s32.totalorder %s309, %s311
      %p315 = scmp.eq.s32.totalorder %s23, 0
      %p316 = por %p314, %p315
      %p317 = scmp.ne.s32.totalorder %s309, %s311
      %p318 = scmp.eq.s32.totalorder %s28, 1
      %p319 = por %p317, %p318
      %p320 = scmp.ne.s32.totalorder %s311, %s312
      %p321 = scmp.eq.s32.totalorder %s28, 0
      %p322 = por %p320, %p321
      %p323 = scmp.ne.s32.totalorder %s311, %s312
      %p324 = scmp.eq.s32.totalorder %s29, 1
      %p325 = por %p323, %p324
      %p327 = scmp.ne.s32.totalorder %s312, %s326
      %p328 = scmp.eq.s32.totalorder %s29, 0
      %p329 = por %p327, %p328
      %s330 = ssub.s32 %s23, %s30
      %p331 = scmp.eq.s32.totalorder %s330, 0
      %s333 = sadd.s32 %s332, 1
      %s334 = scalar_select %p331, %s332, %s333
      %p337 = pneg %p331
      %p338 = scmp.eq.s32.totalorder %s23, 1
      %p339 = por %p337, %p338
      %p340 = scmp.ne.s32.totalorder %s332, %s335
      %p341 = scmp.eq.s32.totalorder %s23, 0
      %p342 = por %p340, %p341
      %p343 = scmp.ne.s32.totalorder %s332, %s335
      %p344 = scmp.eq.s32.totalorder %s28, 1
      %p345 = por %p343, %p344
      %p346 = scmp.ne.s32.totalorder %s335, %s336
      %p347 = scmp.eq.s32.totalorder %s28, 0
      %p348 = por %p346, %p347
      %p349 = scmp.ne.s32.totalorder %s335, %s336
      %p350 = scmp.eq.s32.totalorder %s29, 1
      %p351 = por %p349, %p350
      %p353 = scmp.ne.s32.totalorder %s336, %s352
      %p354 = scmp.eq.s32.totalorder %s29, 0
      %p355 = por %p353, %p354
      %p356 = scmp.le.s32.totalorder 1, %s23
      %p357 = scmp.lt.s32.totalorder %s23, 3
      %p358 = pnand %p356, %p357
      %p359 = pneg %p358
      // Predicated region
      $region9: #{tpu_custom_call.1} parent=5 // pred_check
        _
      $region10: #{tpu_custom_call.1} parent=5 // pred_check_branch
        %361 = sbr.rel (%p358) target = $region12
      $region11: #{tpu_custom_call.1} parent=5 // pred_region
        %s362 = ssub.s32 %s23, 1
        // Predicated region
        $region13: #{tpu_custom_call.1} parent=11 // pred_check
          %p363 = pneg %p70
        $region14: #{tpu_custom_call.1} parent=11 // pred_check_branch
          %365 = sbr.rel (%p363) target = $region16
        $region15: #{tpu_custom_call.1} parent=11 // pred_region
          _
        $region16: #{tpu_custom_call.1} parent=11 // pred_fallthru
          _
        // Predicated region
        $region17: #{tpu_custom_call.1} parent=11 // pred_check
          %p366 = pneg %p91
        $region18: #{tpu_custom_call.1} parent=11 // pred_check_branch
          %368 = sbr.rel (%p366) target = $region20
        $region19: #{tpu_custom_call.1} parent=11 // pred_region
          _
        $region20: #{tpu_custom_call.1} parent=11 // pred_fallthru
          _
        // Predicated region
        $region21: #{tpu_custom_call.1} parent=11 // pred_check
          %p369 = pneg %p112
        $region22: #{tpu_custom_call.1} parent=11 // pred_check_branch
          %371 = sbr.rel (%p369) target = $region24
        $region23: #{tpu_custom_call.1} parent=11 // pred_region
          _
        $region24: #{tpu_custom_call.1} parent=11 // pred_fallthru
          _
        // Predicated region
        $region25: #{tpu_custom_call.1} parent=11 // pred_check
          %p372 = pneg %p133
        $region26: #{tpu_custom_call.1} parent=11 // pred_check_branch
          %374 = sbr.rel (%p372) target = $region28
        $region27: #{tpu_custom_call.1} parent=11 // pred_region
          _
        $region28: #{tpu_custom_call.1} parent=11 // pred_fallthru
          _
        // Predicated region
        $region29: #{tpu_custom_call.1} parent=11 // pred_check
          %p375 = pneg %p154
        $region30: #{tpu_custom_call.1} parent=11 // pred_check_branch
          %377 = sbr.rel (%p375) target = $region32
        $region31: #{tpu_custom_call.1} parent=11 // pred_region
          _
        $region32: #{tpu_custom_call.1} parent=11 // pred_fallthru
          _
        // Predicated region
        $region33: #{tpu_custom_call.1} parent=11 // pred_check
          %p378 = pneg %p175
        $region34: #{tpu_custom_call.1} parent=11 // pred_check_branch
          %380 = sbr.rel (%p378) target = $region36
        $region35: #{tpu_custom_call.1} parent=11 // pred_region
          _
        $region36: #{tpu_custom_call.1} parent=11 // pred_fallthru
          _
        // Predicated region
        $region37: #{tpu_custom_call.1} parent=11 // pred_check
          %p381 = pneg %p196
        $region38: #{tpu_custom_call.1} parent=11 // pred_check_branch
          %383 = sbr.rel (%p381) target = $region40
        $region39: #{tpu_custom_call.1} parent=11 // pred_region
          _
        $region40: #{tpu_custom_call.1} parent=11 // pred_fallthru
          _
        // Predicated region
        $region41: #{tpu_custom_call.1} parent=11 // pred_check
          %p384 = pneg %p217
        $region42: #{tpu_custom_call.1} parent=11 // pred_check_branch
          %386 = sbr.rel (%p384) target = $region44
        $region43: #{tpu_custom_call.1} parent=11 // pred_region
          _
        $region44: #{tpu_custom_call.1} parent=11 // pred_fallthru
          _
        // Predicated region
        $region45: #{tpu_custom_call.1} parent=11 // pred_check
          %p387 = pneg %p238
        $region46: #{tpu_custom_call.1} parent=11 // pred_check_branch
          %389 = sbr.rel (%p387) target = $region48
        $region47: #{tpu_custom_call.1} parent=11 // pred_region
          _
        $region48: #{tpu_custom_call.1} parent=11 // pred_fallthru
          _
        // Predicated region
        $region49: #{tpu_custom_call.1} parent=11 // pred_check
          %p390 = pneg %p259
        $region50: #{tpu_custom_call.1} parent=11 // pred_check_branch
          %392 = sbr.rel (%p390) target = $region52
        $region51: #{tpu_custom_call.1} parent=11 // pred_region
          _
        $region52: #{tpu_custom_call.1} parent=11 // pred_fallthru
          _
        // Predicated region
        $region53: #{tpu_custom_call.1} parent=11 // pred_check
          %p393 = pneg %p280
        $region54: #{tpu_custom_call.1} parent=11 // pred_check_branch
          %395 = sbr.rel (%p393) target = $region56
        $region55: #{tpu_custom_call.1} parent=11 // pred_region
          _
        $region56: #{tpu_custom_call.1} parent=11 // pred_fallthru
          _
        // Predicated region
        $region57: #{tpu_custom_call.1} parent=11 // pred_check
          %p396 = pneg %p301
        $region58: #{tpu_custom_call.1} parent=11 // pred_check_branch
          %398 = sbr.rel (%p396) target = $region60
        $region59: #{tpu_custom_call.1} parent=11 // pred_region
          _
        $region60: #{tpu_custom_call.1} parent=11 // pred_fallthru
          _
        // Predicated region
        $region61: #{tpu_custom_call.1} parent=11 // pred_check
          %p399 = pneg %p322
        $region62: #{tpu_custom_call.1} parent=11 // pred_check_branch
          %401 = sbr.rel (%p399) target = $region64
        $region63: #{tpu_custom_call.1} parent=11 // pred_region
          _
        $region64: #{tpu_custom_call.1} parent=11 // pred_fallthru
          _
      $region12: #{tpu_custom_call.1} parent=5 // pred_fallthru
        _
      %p402 = scmp.lt.s32.totalorder %s23, 2
      // Predicated region
      $region65: #{tpu_custom_call.1} parent=5 // pred_check
        %p403 = pneg %p402
      $region66: #{tpu_custom_call.1} parent=5 // pred_check_branch
        %405 = sbr.rel (%p403) target = $region68
      $region67: #{tpu_custom_call.1} parent=5 // pred_region
        // Predicated region
        $region69: #{tpu_custom_call.1} parent=67 // pred_check
          %p406 = pneg %p43
        $region70: #{tpu_custom_call.1} parent=67 // pred_check_branch
          %408 = sbr.rel (%p406) target = $region72
        $region71: #{tpu_custom_call.1} parent=67 // pred_region
          %p409 = scmp.lt.s32.totalorder %s23, 1
          %s410 = scalar_select %p409, %s23, 1
          %s411 = smul.addr %s410, 9
          %s412 = smul.addr %s411, 8
          %s413 = scalar_lea.vmem %s0, %s412
        $region72: #{tpu_custom_call.1} parent=67 // pred_fallthru
          _
      $region68: #{tpu_custom_call.1} parent=5 // pred_fallthru
        _
      %p414 = scmp.le.s32.totalorder 1, %s23
      %p415 = scmp.lt.s32.totalorder %s23, 3
      %p416 = pnand %p414, %p415
      %p417 = pneg %p416
      // Predicated region
      $region73: #{tpu_custom_call.1} parent=5 // pred_check
        _
      $region74: #{tpu_custom_call.1} parent=5 // pred_check_branch
        %419 = sbr.rel (%p416) target = $region76
      $region75: #{tpu_custom_call.1} parent=5 // pred_region
        %s420 = ssub.s32 %s23, 1
        %p421 = scmp.lt.s32.totalorder %s28, 1
        %s422 = scalar_select %p421, %s28, 1
        %s423 = smul.addr %s422, 9
        %s424 = smul.addr %s423, 8
        %s425 = scalar_lea.vmem %s0, %s424
        %p426 = pneg %p49
        %p427 = pneg %p46
        %p428 = pneg %p70
        %p429 = pneg %p67
        %p430 = pneg %p91
        %p431 = pneg %p88
        %p432 = pneg %p112
        %p433 = pneg %p109
        %p434 = pneg %p133
        %p435 = pneg %p130
        %p436 = pneg %p154
        %p437 = pneg %p151
        %p438 = pneg %p175
        %p439 = pneg %p172
        %p440 = pneg %p196
        %p441 = pneg %p193
        %p442 = pneg %p217
        %p443 = pneg %p214
        %p444 = pneg %p238
        %p445 = pneg %p235
        %p446 = pneg %p259
        %p447 = pneg %p256
        %p448 = pneg %p280
        %p449 = pneg %p277
        %p450 = pneg %p301
        %p451 = pneg %p298
        %p452 = pneg %p322
        %p453 = pneg %p319
        %p454 = pneg %p348
        %p455 = pneg %p345
        %s456 = sand.u32 %s335, 1
        %s457 = scalar_lea.sflag [#allocation3], %s456
        %s458 = sand.u32 %s335, 1
        %s459 = smul.addr %s458, 4
        %s460 = scalar_lea.vmem [#allocation2], %s459
        %p461 = scmp.lt.s32.totalorder %s28, 1
        %s462 = scalar_select %p461, %s28, 1
        %s463 = smul.addr %s462, 9
        %s464 = smul.addr %s463, 8
        %s465 = scalar_lea.vmem %s0, %s464
        %v466 = vld [vmem:[%s465] sm:$0xff]
        %v467 = vld [vmem:[%s465 + $0x8] sm:$0xff]
        %v468 = vld [vmem:[%s465 + $0x10] sm:$0xff]
        %v469 = vld [vmem:[%s465 + $0x18] sm:$0xff]
        %v470 = vld [vmem:[%s465 + $0x20] sm:$0xff]
        %v471 = vld [vmem:[%s465 + $0x28] sm:$0xff]
        %v472 = vld [vmem:[%s465 + $0x30] sm:$0xff]
        %v473 = vld [vmem:[%s465 + $0x38] sm:$0xff]
        %v474 = vld [vmem:[%s465 + $0x40] sm:$0xf]
        %v475 = vld [vmem:[%s1] sm:$0xff]
        %v476 = vld [vmem:[%s1 + $0x8] sm:$0xff]
        %v477 = vld [vmem:[%s1 + $0x10] sm:$0xff]
        %v478 = vld [vmem:[%s1 + $0x18] sm:$0xff]
        %v479 = vld [vmem:[%s1 + $0x20] sm:$0xff]
        %v480 = vld [vmem:[%s1 + $0x28] sm:$0xff]
        %v481 = vld [vmem:[%s1 + $0x30] sm:$0xff]
        %v482 = vld [vmem:[%s1 + $0x38] sm:$0xff]
        %v483 = vld [vmem:[%s1 + $0x40] sm:$0xff]
        %v484 = vld [vmem:[%s1 + $0x48] sm:$0xff]
        %v485 = vld [vmem:[%s1 + $0x50] sm:$0xff]
        %v486 = vld [vmem:[%s1 + $0x58] sm:$0xff]
        %v487 = vld [vmem:[%s1 + $0x60] sm:$0xff]
        %v488 = vld [vmem:[%s1 + $0x68] sm:$0xff]
        %v489 = vld [vmem:[%s1 + $0x70] sm:$0xff]
        %v490 = vld [vmem:[%s1 + $0x78] sm:$0xff]
        %v491 = vld [vmem:[%s1 + $0x80] sm:$0xff]
        %v492 = vld [vmem:[%s1 + $0x88] sm:$0xff]
        %v493 = vld [vmem:[%s1 + $0x90] sm:$0xff]
        %v494 = vld [vmem:[%s1 + $0x98] sm:$0xff]
        %v495 = vld [vmem:[%s1 + $0xa0] sm:$0xff]
        %v496 = vld [vmem:[%s1 + $0xa8] sm:$0xff]
        %v497 = vld [vmem:[%s1 + $0xb0] sm:$0xff]
        %v498 = vld [vmem:[%s1 + $0xb8] sm:$0xff]
        %v499 = vld [vmem:[%s1 + $0xc0] sm:$0xff]
        %v500 = vld [vmem:[%s1 + $0xc8] sm:$0xff]
        %v501 = vld [vmem:[%s1 + $0xd0] sm:$0xff]
        %v502 = vld [vmem:[%s1 + $0xd8] sm:$0xff]
        %v503 = vld [vmem:[%s1 + $0xe0] sm:$0xff]
        %v504 = vld [vmem:[%s1 + $0xe8] sm:$0xff]
        %v505 = vld [vmem:[%s1 + $0xf0] sm:$0xff]
        %v506 = vld [vmem:[%s1 + $0xf8] sm:$0xff]
        %v507 = vld [vmem:[%s1 + $0x100] sm:$0xff]
        %v508 = vld [vmem:[%s1 + $0x108] sm:$0xff]
        %v509 = vld [vmem:[%s1 + $0x110] sm:$0xff]
        %v510 = vld [vmem:[%s1 + $0x118] sm:$0xff]
        %v511 = vld [vmem:[%s1 + $0x120] sm:$0xff]
        %v512 = vld [vmem:[%s1 + $0x128] sm:$0xff]
        %v513 = vld [vmem:[%s1 + $0x130] sm:$0xff]
        %v514 = vld [vmem:[%s1 + $0x138] sm:$0xff]
        %vm515 = vcmask 556032
        %v517 = vsel %vm515, %v475, 0
        %v520 = vsel %vm515, %v476, 0
        %v523 = vsel %vm515, %v477, 0
        %v526 = vsel %vm515, %v478, 0
        %v529 = vsel %vm515, %v479, 0
        %v532 = vsel %vm515, %v480, 0
        %v535 = vsel %vm515, %v481, 0
        %v538 = vsel %vm515, %v482, 0
        %v541 = vsel %vm515, %v483, 0
        %v544 = vsel %vm515, %v484, 0
        %v547 = vsel %vm515, %v485, 0
        %v550 = vsel %vm515, %v486, 0
        %v553 = vsel %vm515, %v487, 0
        %v556 = vsel %vm515, %v488, 0
        %v559 = vsel %vm515, %v489, 0
        %v562 = vsel %vm515, %v490, 0
        %v565 = vsel %vm515, %v491, 0
        %v568 = vsel %vm515, %v492, 0
        %v571 = vsel %vm515, %v493, 0
        %v574 = vsel %vm515, %v494, 0
        %v577 = vsel %vm515, %v495, 0
        %v580 = vsel %vm515, %v496, 0
        %v583 = vsel %vm515, %v497, 0
        %v586 = vsel %vm515, %v498, 0
        %v589 = vsel %vm515, %v499, 0
        %v592 = vsel %vm515, %v500, 0
        %v595 = vsel %vm515, %v501, 0
        %v598 = vsel %vm515, %v502, 0
        %v601 = vsel %vm515, %v503, 0
        %v604 = vsel %vm515, %v504, 0
        %v607 = vsel %vm515, %v505, 0
        %v610 = vsel %vm515, %v506, 0
        %v613 = vsel %vm515, %v507, 0
        %v616 = vsel %vm515, %v508, 0
        %v619 = vsel %vm515, %v509, 0
        %v622 = vsel %vm515, %v510, 0
        %v625 = vsel %vm515, %v511, 0
        %v628 = vsel %vm515, %v512, 0
        %v631 = vsel %vm515, %v513, 0
        %v634 = vsel %vm515, %v514, 0
        %vm636 = vcmask 1043456
        %v638 = vsel %vm636, %v474, 0
        %640 = vmatpush.msra.mxu0 0.0
        %641 = vmatpush.msra.mxu0 0.0
        %642 = vmatpush.msra.mxu0 0.0
        %643 = vmatpush.msra.mxu0 0.0
        %644 = vmatpush.msra.mxu0 0.0
        %645 = vmatpush.msra.mxu0 0.0
        %646 = vmatpush.msra.mxu0 0.0
        %647 = vmatpush.msra.mxu0 %v638
        %648 = vmatpush.msra.mxu0 %v473
        %649 = vmatpush.msra.mxu0 %v472
        %650 = vmatpush.msra.mxu0 %v471
        %651 = vmatpush.msra.mxu0 %v470
        %652 = vmatpush.msra.mxu0 %v469
        %653 = vmatpush.msra.mxu0 %v468
        %654 = vmatpush.msra.mxu0 %v467
        %655 = vmatpush.msra.mxu0 %v466
        %656 = vmatmul.f32.gmra.mxu0 %v517
        %v657 = vpop.f32.mrf.mxu0
        %v658 = vadd.f32 0.0, %v657
        %659 = vmatmul.f32.gmra.mxu0 %v520
        %v660 = vpop.f32.mrf.mxu0
        %v661 = vadd.f32 0.0, %v660
        %662 = vmatmul.f32.gmra.mxu0 %v523
        %v663 = vpop.f32.mrf.mxu0
        %v664 = vadd.f32 0.0, %v663
        %665 = vmatmul.f32.gmra.mxu0 %v526
        %v666 = vpop.f32.mrf.mxu0
        %v667 = vadd.f32 0.0, %v666
        %668 = vmatmul.f32.gmra.mxu0 %v529
        %v669 = vpop.f32.mrf.mxu0
        %v670 = vadd.f32 0.0, %v669
        %671 = vmatmul.f32.gmra.mxu0 %v532
        %v672 = vpop.f32.mrf.mxu0
        %v673 = vadd.f32 0.0, %v672
        %674 = vmatmul.f32.gmra.mxu0 %v535
        %v675 = vpop.f32.mrf.mxu0
        %v676 = vadd.f32 0.0, %v675
        %677 = vmatmul.f32.gmra.mxu0 %v538
        %v678 = vpop.f32.mrf.mxu0
        %v679 = vadd.f32 0.0, %v678
        %680 = vmatmul.f32.gmra.mxu0 %v541
        %v681 = vpop.f32.mrf.mxu0
        %v682 = vadd.f32 0.0, %v681
        %683 = vmatmul.f32.gmra.mxu0 %v544
        %v684 = vpop.f32.mrf.mxu0
        %v685 = vadd.f32 0.0, %v684
        %686 = vmatmul.f32.gmra.mxu0 %v547
        %v687 = vpop.f32.mrf.mxu0
        %v688 = vadd.f32 0.0, %v687
        %689 = vmatmul.f32.gmra.mxu0 %v550
        %v690 = vpop.f32.mrf.mxu0
        %v691 = vadd.f32 0.0, %v690
        %692 = vmatmul.f32.gmra.mxu0 %v553
        %v693 = vpop.f32.mrf.mxu0
        %v694 = vadd.f32 0.0, %v693
        %695 = vmatmul.f32.gmra.mxu0 %v556
        %v696 = vpop.f32.mrf.mxu0
        %v697 = vadd.f32 0.0, %v696
        %698 = vmatmul.f32.gmra.mxu0 %v559
        %v699 = vpop.f32.mrf.mxu0
        %v700 = vadd.f32 0.0, %v699
        %701 = vmatmul.f32.gmra.mxu0 %v562
        %v702 = vpop.f32.mrf.mxu0
        %v703 = vadd.f32 0.0, %v702
        %704 = vmatmul.f32.gmra.mxu0 %v565
        %v705 = vpop.f32.mrf.mxu0
        %v706 = vadd.f32 0.0, %v705
        %707 = vmatmul.f32.gmra.mxu0 %v568
        %v708 = vpop.f32.mrf.mxu0
        %v709 = vadd.f32 0.0, %v708
        %710 = vmatmul.f32.gmra.mxu0 %v571
        %v711 = vpop.f32.mrf.mxu0
        %v712 = vadd.f32 0.0, %v711
        %713 = vmatmul.f32.gmra.mxu0 %v574
        %v714 = vpop.f32.mrf.mxu0
        %v715 = vadd.f32 0.0, %v714
        %716 = vmatmul.f32.gmra.mxu0 %v577
        %v717 = vpop.f32.mrf.mxu0
        %v718 = vadd.f32 0.0, %v717
        %719 = vmatmul.f32.gmra.mxu0 %v580
        %v720 = vpop.f32.mrf.mxu0
        %v721 = vadd.f32 0.0, %v720
        %722 = vmatmul.f32.gmra.mxu0 %v583
        %v723 = vpop.f32.mrf.mxu0
        %v724 = vadd.f32 0.0, %v723
        %725 = vmatmul.f32.gmra.mxu0 %v586
        %v726 = vpop.f32.mrf.mxu0
        %v727 = vadd.f32 0.0, %v726
        %728 = vmatmul.f32.gmra.mxu0 %v589
        %v729 = vpop.f32.mrf.mxu0
        %v730 = vadd.f32 0.0, %v729
        %731 = vmatmul.f32.gmra.mxu0 %v592
        %v732 = vpop.f32.mrf.mxu0
        %v733 = vadd.f32 0.0, %v732
        %734 = vmatmul.f32.gmra.mxu0 %v595
        %v735 = vpop.f32.mrf.mxu0
        %v736 = vadd.f32 0.0, %v735
        %737 = vmatmul.f32.gmra.mxu0 %v598
        %v738 = vpop.f32.mrf.mxu0
        %v739 = vadd.f32 0.0, %v738
        %740 = vmatmul.f32.gmra.mxu0 %v601
        %v741 = vpop.f32.mrf.mxu0
        %v742 = vadd.f32 0.0, %v741
        %743 = vmatmul.f32.gmra.mxu0 %v604
        %v744 = vpop.f32.mrf.mxu0
        %v745 = vadd.f32 0.0, %v744
        %746 = vmatmul.f32.gmra.mxu0 %v607
        %v747 = vpop.f32.mrf.mxu0
        %v748 = vadd.f32 0.0, %v747
        %749 = vmatmul.f32.gmra.mxu0 %v610
        %v750 = vpop.f32.mrf.mxu0
        %v751 = vadd.f32 0.0, %v750
        %752 = vmatmul.f32.gmra.mxu0 %v613
        %v753 = vpop.f32.mrf.mxu0
        %v754 = vadd.f32 0.0, %v753
        %755 = vmatmul.f32.gmra.mxu0 %v616
        %v756 = vpop.f32.mrf.mxu0
        %v757 = vadd.f32 0.0, %v756
        %758 = vmatmul.f32.gmra.mxu0 %v619
        %v759 = vpop.f32.mrf.mxu0
        %v760 = vadd.f32 0.0, %v759
        %761 = vmatmul.f32.gmra.mxu0 %v622
        %v762 = vpop.f32.mrf.mxu0
        %v763 = vadd.f32 0.0, %v762
        %764 = vmatmul.f32.gmra.mxu0 %v625
        %v765 = vpop.f32.mrf.mxu0
        %v766 = vadd.f32 0.0, %v765
        %767 = vmatmul.f32.gmra.mxu0 %v628
        %v768 = vpop.f32.mrf.mxu0
        %v769 = vadd.f32 0.0, %v768
        %770 = vmatmul.f32.gmra.mxu0 %v631
        %v771 = vpop.f32.mrf.mxu0
        %v772 = vadd.f32 0.0, %v771
        %773 = vmatmul.f32.gmra.mxu0 %v634
        %v774 = vpop.f32.mrf.mxu0
        %v775 = vadd.f32 0.0, %v774
        %776 = vdwg.mxu0
        %785 = vrot.lane.b32.xlu0 %v682, 8
        %v786 = vpop.permute.xlu0 %785
        %787 = vrot.lane.b32.xlu0 %v685, 8
        %v788 = vpop.permute.xlu0 %787
        %789 = vrot.lane.b32.xlu0 %v688, 8
        %v790 = vpop.permute.xlu0 %789
        %791 = vrot.lane.b32.xlu0 %v691, 8
        %v792 = vpop.permute.xlu0 %791
        %793 = vrot.lane.b32.xlu0 %v694, 8
        %v794 = vpop.permute.xlu0 %793
        %795 = vrot.lane.b32.xlu0 %v697, 8
        %v796 = vpop.permute.xlu0 %795
        %797 = vrot.lane.b32.xlu0 %v700, 8
        %v798 = vpop.permute.xlu0 %797
        %799 = vrot.lane.b32.xlu0 %v703, 8
        %v800 = vpop.permute.xlu0 %799
        %817 = vrot.lane.b32.xlu0 %v706, 16
        %v818 = vpop.permute.xlu0 %817
        %819 = vrot.lane.b32.xlu0 %v709, 16
        %v820 = vpop.permute.xlu0 %819
        %821 = vrot.lane.b32.xlu0 %v712, 16
        %v822 = vpop.permute.xlu0 %821
        %823 = vrot.lane.b32.xlu0 %v715, 16
        %v824 = vpop.permute.xlu0 %823
        %825 = vrot.lane.b32.xlu0 %v718, 16
        %v826 = vpop.permute.xlu0 %825
        %827 = vrot.lane.b32.xlu0 %v721, 16
        %v828 = vpop.permute.xlu0 %827
        %829 = vrot.lane.b32.xlu0 %v724, 16
        %v830 = vpop.permute.xlu0 %829
        %831 = vrot.lane.b32.xlu0 %v727, 16
        %v832 = vpop.permute.xlu0 %831
        %849 = vrot.lane.b32.xlu0 %v730, 24
        %v850 = vpop.permute.xlu0 %849
        %851 = vrot.lane.b32.xlu0 %v733, 24
        %v852 = vpop.permute.xlu0 %851
        %853 = vrot.lane.b32.xlu0 %v736, 24
        %v854 = vpop.permute.xlu0 %853
        %855 = vrot.lane.b32.xlu0 %v739, 24
        %v856 = vpop.permute.xlu0 %855
        %857 = vrot.lane.b32.xlu0 %v742, 24
        %v858 = vpop.permute.xlu0 %857
        %859 = vrot.lane.b32.xlu0 %v745, 24
        %v860 = vpop.permute.xlu0 %859
        %861 = vrot.lane.b32.xlu0 %v748, 24
        %v862 = vpop.permute.xlu0 %861
        %863 = vrot.lane.b32.xlu0 %v751, 24
        %v864 = vpop.permute.xlu0 %863
        %881 = vrot.lane.b32.xlu0 %v754, 32
        %v882 = vpop.permute.xlu0 %881
        %883 = vrot.lane.b32.xlu0 %v757, 32
        %v884 = vpop.permute.xlu0 %883
        %885 = vrot.lane.b32.xlu0 %v760, 32
        %v886 = vpop.permute.xlu0 %885
        %887 = vrot.lane.b32.xlu0 %v763, 32
        %v888 = vpop.permute.xlu0 %887
        %889 = vrot.lane.b32.xlu0 %v766, 32
        %v890 = vpop.permute.xlu0 %889
        %891 = vrot.lane.b32.xlu0 %v769, 32
        %v892 = vpop.permute.xlu0 %891
        %893 = vrot.lane.b32.xlu0 %v772, 32
        %v894 = vpop.permute.xlu0 %893
        %895 = vrot.lane.b32.xlu0 %v775, 32
        %v896 = vpop.permute.xlu0 %895
        %vm905 = vcmask 64512
        %v906 = vsel %vm905, %v658, %v786
        %v907 = vsel %vm905, %v661, %v788
        %v908 = vsel %vm905, %v664, %v790
        %v909 = vsel %vm905, %v667, %v792
        %v910 = vsel %vm905, %v670, %v794
        %v911 = vsel %vm905, %v673, %v796
        %v912 = vsel %vm905, %v676, %v798
        %v913 = vsel %vm905, %v679, %v800
        %vm914 = vcmask 130048
        %v915 = vsel %vm914, %v906, %v818
        %v916 = vsel %vm914, %v907, %v820
        %v917 = vsel %vm914, %v908, %v822
        %v918 = vsel %vm914, %v909, %v824
        %v919 = vsel %vm914, %v910, %v826
        %v920 = vsel %vm914, %v911, %v828
        %v921 = vsel %vm914, %v912, %v830
        %v922 = vsel %vm914, %v913, %v832
        %vm923 = vcmask 195584
        %v924 = vsel %vm923, %v915, %v850
        %v925 = vsel %vm923, %v916, %v852
        %v926 = vsel %vm923, %v917, %v854
        %v927 = vsel %vm923, %v918, %v856
        %v928 = vsel %vm923, %v919, %v858
        %v929 = vsel %vm923, %v920, %v860
        %v930 = vsel %vm923, %v921, %v862
        %v931 = vsel %vm923, %v922, %v864
        %vm932 = vcmask 261120
        %v933 = vsel %vm932, %v924, %v882
        %v934 = vsel %vm932, %v925, %v884
        %v935 = vsel %vm932, %v926, %v886
        %v936 = vsel %vm932, %v927, %v888
        %v937 = vsel %vm932, %v928, %v890
        %v938 = vsel %vm932, %v929, %v892
        %v939 = vsel %vm932, %v930, %v894
        %v940 = vsel %vm932, %v931, %v896
        %v941 = vld [vmem:[%s2] sm:$0xff]
        %v942 = vld [vmem:[%s2 + $0x8] sm:$0xff]
        %v943 = vld [vmem:[%s2 + $0x10] sm:$0xff]
        %v944 = vld [vmem:[%s2 + $0x18] sm:$0xff]
        %v945 = vld [vmem:[%s2 + $0x20] sm:$0xff]
        %v946 = vld [vmem:[%s3] sm:$0x1]
        %v948 = vperm.slane %v946, 0
        %vm950 = vcmask 326656
        %v952 = vsel %vm950, %v933, 0
        %v955 = vsel %vm950, %v934, 0
        %v958 = vsel %vm950, %v935, 0
        %v961 = vsel %vm950, %v936, 0
        %v964 = vsel %vm950, %v937, 0
        %v967 = vsel %vm950, %v938, 0
        %v970 = vsel %vm950, %v939, 0
        %v973 = vsel %vm950, %v940, 0
        %975 = vmatpush.msra.mxu0 0.0
        %976 = vmatpush.msra.mxu0 0.0
        %977 = vmatpush.msra.mxu0 0.0
        %978 = vmatpush.msra.mxu0 0.0
        %979 = vmatpush.msra.mxu0 0.0
        %980 = vmatpush.msra.mxu0 0.0
        %981 = vmatpush.msra.mxu0 0.0
        %982 = vmatpush.msra.mxu0 0.0
        %983 = vmatpush.msra.mxu0 0.0
        %984 = vmatpush.msra.mxu0 0.0
        %985 = vmatpush.msra.mxu0 0.0
        %986 = vmatpush.msra.mxu0 %v945
        %987 = vmatpush.msra.mxu0 %v944
        %988 = vmatpush.msra.mxu0 %v943
        %989 = vmatpush.msra.mxu0 %v942
        %990 = vmatpush.msra.mxu0 %v941
        %991 = vmatmul.f32.gmra.mxu0 %v952
        %v992 = vpop.f32.mrf.mxu0
        %v993 = vadd.f32 %v948, %v992
        %994 = vmatmul.f32.gmra.mxu0 %v955
        %v995 = vpop.f32.mrf.mxu0
        %v996 = vadd.f32 %v948, %v995
        %997 = vmatmul.f32.gmra.mxu0 %v958
        %v998 = vpop.f32.mrf.mxu0
        %v999 = vadd.f32 %v948, %v998
        %1000 = vmatmul.f32.gmra.mxu0 %v961
        %v1001 = vpop.f32.mrf.mxu0
        %v1002 = vadd.f32 %v948, %v1001
        %1003 = vmatmul.f32.gmra.mxu0 %v964
        %v1004 = vpop.f32.mrf.mxu0
        %v1005 = vadd.f32 %v948, %v1004
        %1006 = vmatmul.f32.gmra.mxu0 %v967
        %v1007 = vpop.f32.mrf.mxu0
        %v1008 = vadd.f32 %v948, %v1007
        %1009 = vmatmul.f32.gmra.mxu0 %v970
        %v1010 = vpop.f32.mrf.mxu0
        %v1011 = vadd.f32 %v948, %v1010
        %1012 = vmatmul.f32.gmra.mxu0 %v973
        %v1013 = vpop.f32.mrf.mxu0
        %v1014 = vadd.f32 %v948, %v1013
        %1015 = vdwg.mxu0
        %v1016 = vmax.f32 %v993, 0.0
        %v1017 = vmax.f32 %v996, 0.0
        %v1018 = vmax.f32 %v999, 0.0
        %v1019 = vmax.f32 %v1002, 0.0
        %v1020 = vmax.f32 %v1005, 0.0
        %v1021 = vmax.f32 %v1008, 0.0
        %v1022 = vmax.f32 %v1011, 0.0
        %v1023 = vmax.f32 %v1014, 0.0
        %v1024 = vld [vmem:[%s4] sm:$0xff]
        %v1025 = vld [vmem:[%s4 + $0x8] sm:$0xff]
        %v1026 = vld [vmem:[%s4 + $0x10] sm:$0xff]
        %v1027 = vld [vmem:[%s4 + $0x18] sm:$0xff]
        %v1028 = vld [vmem:[%s4 + $0x20] sm:$0xff]
        %v1029 = vld [vmem:[%s4 + $0x28] sm:$0xff]
        %v1030 = vld [vmem:[%s4 + $0x30] sm:$0xff]
        %v1031 = vld [vmem:[%s4 + $0x38] sm:$0xff]
        %v1032 = vld [vmem:[%s4 + $0x40] sm:$0xff]
        %v1033 = vld [vmem:[%s4 + $0x48] sm:$0xff]
        %v1034 = vld [vmem:[%s4 + $0x50] sm:$0xff]
        %v1035 = vld [vmem:[%s4 + $0x58] sm:$0xff]
        %v1036 = vld [vmem:[%s4 + $0x60] sm:$0xff]
        %v1037 = vld [vmem:[%s4 + $0x68] sm:$0xff]
        %v1038 = vld [vmem:[%s4 + $0x70] sm:$0xff]
        %v1039 = vld [vmem:[%s4 + $0x78] sm:$0xff]
        %v1040 = vld [vmem:[%s4 + $0x80] sm:$0xff]
        %v1041 = vld [vmem:[%s4 + $0x88] sm:$0xff]
        %v1042 = vld [vmem:[%s4 + $0x90] sm:$0xff]
        %v1043 = vld [vmem:[%s4 + $0x98] sm:$0xff]
        %vm1044 = vcmask 523264
        %v1046 = vsel %vm1044, %v1024, 0
        %v1049 = vsel %vm1044, %v1025, 0
        %v1052 = vsel %vm1044, %v1026, 0
        %v1055 = vsel %vm1044, %v1027, 0
        %v1058 = vsel %vm1044, %v1028, 0
        %v1061 = vsel %vm1044, %v1029, 0
        %v1064 = vsel %vm1044, %v1030, 0
        %v1067 = vsel %vm1044, %v1031, 0
        %v1070 = vsel %vm1044, %v1032, 0
        %v1073 = vsel %vm1044, %v1033, 0
        %v1076 = vsel %vm1044, %v1034, 0
        %v1079 = vsel %vm1044, %v1035, 0
        %v1082 = vsel %vm1044, %v1036, 0
        %v1085 = vsel %vm1044, %v1037, 0
        %v1088 = vsel %vm1044, %v1038, 0
        %v1091 = vsel %vm1044, %v1039, 0
        %v1094 = vsel %vm1044, %v1040, 0
        %v1097 = vsel %vm1044, %v1041, 0
        %v1100 = vsel %vm1044, %v1042, 0
        %v1103 = vsel %vm1044, %v1043, 0
        %1105 = vmatpush.msra.mxu0 0.0
        %1106 = vmatpush.msra.mxu0 0.0
        %1107 = vmatpush.msra.mxu0 0.0
        %1108 = vmatpush.msra.mxu0 0.0
        %1109 = vmatpush.msra.mxu0 0.0
        %1110 = vmatpush.msra.mxu0 0.0
        %1111 = vmatpush.msra.mxu0 0.0
        %1112 = vmatpush.msra.mxu0 0.0
        %1113 = vmatpush.msra.mxu0 %v1023
        %1114 = vmatpush.msra.mxu0 %v1022
        %1115 = vmatpush.msra.mxu0 %v1021
        %1116 = vmatpush.msra.mxu0 %v1020
        %1117 = vmatpush.msra.mxu0 %v1019
        %1118 = vmatpush.msra.mxu0 %v1018
        %1119 = vmatpush.msra.mxu0 %v1017
        %1120 = vmatpush.msra.mxu0 %v1016
        %1121 = vmatmul.f32.gmra.mxu0 %v1046
        %v1122 = vpop.f32.mrf.mxu0
        %v1123 = vadd.f32 0.0, %v1122
        %1124 = vmatmul.f32.gmra.mxu0 %v1049
        %v1125 = vpop.f32.mrf.mxu0
        %v1126 = vadd.f32 0.0, %v1125
        %1127 = vmatmul.f32.gmra.mxu0 %v1052
        %v1128 = vpop.f32.mrf.mxu0
        %v1129 = vadd.f32 0.0, %v1128
        %1130 = vmatmul.f32.gmra.mxu0 %v1055
        %v1131 = vpop.f32.mrf.mxu0
        %v1132 = vadd.f32 0.0, %v1131
        %1133 = vmatmul.f32.gmra.mxu0 %v1058
        %v1134 = vpop.f32.mrf.mxu0
        %v1135 = vadd.f32 0.0, %v1134
        %1136 = vmatmul.f32.gmra.mxu0 %v1061
        %v1137 = vpop.f32.mrf.mxu0
        %v1138 = vadd.f32 0.0, %v1137
        %1139 = vmatmul.f32.gmra.mxu0 %v1064
        %v1140 = vpop.f32.mrf.mxu0
        %v1141 = vadd.f32 0.0, %v1140
        %1142 = vmatmul.f32.gmra.mxu0 %v1067
        %v1143 = vpop.f32.mrf.mxu0
        %v1144 = vadd.f32 0.0, %v1143
        %1145 = vmatmul.f32.gmra.mxu0 %v1070
        %v1146 = vpop.f32.mrf.mxu0
        %v1147 = vadd.f32 0.0, %v1146
        %1148 = vmatmul.f32.gmra.mxu0 %v1073
        %v1149 = vpop.f32.mrf.mxu0
        %v1150 = vadd.f32 0.0, %v1149
        %1151 = vmatmul.f32.gmra.mxu0 %v1076
        %v1152 = vpop.f32.mrf.mxu0
        %v1153 = vadd.f32 0.0, %v1152
        %1154 = vmatmul.f32.gmra.mxu0 %v1079
        %v1155 = vpop.f32.mrf.mxu0
        %v1156 = vadd.f32 0.0, %v1155
        %1157 = vmatmul.f32.gmra.mxu0 %v1082
        %v1158 = vpop.f32.mrf.mxu0
        %v1159 = vadd.f32 0.0, %v1158
        %1160 = vmatmul.f32.gmra.mxu0 %v1085
        %v1161 = vpop.f32.mrf.mxu0
        %v1162 = vadd.f32 0.0, %v1161
        %1163 = vmatmul.f32.gmra.mxu0 %v1088
        %v1164 = vpop.f32.mrf.mxu0
        %v1165 = vadd.f32 0.0, %v1164
        %1166 = vmatmul.f32.gmra.mxu0 %v1091
        %v1167 = vpop.f32.mrf.mxu0
        %v1168 = vadd.f32 0.0, %v1167
        %1169 = vmatmul.f32.gmra.mxu0 %v1094
        %v1170 = vpop.f32.mrf.mxu0
        %v1171 = vadd.f32 0.0, %v1170
        %1172 = vmatmul.f32.gmra.mxu0 %v1097
        %v1173 = vpop.f32.mrf.mxu0
        %v1174 = vadd.f32 0.0, %v1173
        %1175 = vmatmul.f32.gmra.mxu0 %v1100
        %v1176 = vpop.f32.mrf.mxu0
        %v1177 = vadd.f32 0.0, %v1176
        %1178 = vmatmul.f32.gmra.mxu0 %v1103
        %v1179 = vpop.f32.mrf.mxu0
        %v1180 = vadd.f32 0.0, %v1179
        %1181 = vdwg.mxu0
        %1186 = vrot.lane.b32.xlu0 %v1135, 64
        %v1187 = vpop.permute.xlu0 %1186
        %1188 = vrot.lane.b32.xlu0 %v1138, 64
        %v1189 = vpop.permute.xlu0 %1188
        %1190 = vrot.lane.b32.xlu0 %v1141, 64
        %v1191 = vpop.permute.xlu0 %1190
        %1192 = vrot.lane.b32.xlu0 %v1144, 64
        %v1193 = vpop.permute.xlu0 %1192
        %1202 = vrot.lane.b32.xlu0 %v1159, 64
        %v1203 = vpop.permute.xlu0 %1202
        %1204 = vrot.lane.b32.xlu0 %v1162, 64
        %v1205 = vpop.permute.xlu0 %1204
        %1206 = vrot.lane.b32.xlu0 %v1165, 64
        %v1207 = vpop.permute.xlu0 %1206
        %1208 = vrot.lane.b32.xlu0 %v1168, 64
        %v1209 = vpop.permute.xlu0 %1208
        %v1214 = vsel %vm1044, %v1123, %v1187
        %v1215 = vsel %vm1044, %v1126, %v1189
        %v1216 = vsel %vm1044, %v1129, %v1191
        %v1217 = vsel %vm1044, %v1132, %v1193
        %v1218 = vsel %vm1044, %v1147, %v1203
        %v1219 = vsel %vm1044, %v1150, %v1205
        %v1220 = vsel %vm1044, %v1153, %v1207
        %v1221 = vsel %vm1044, %v1156, %v1209
        %v1222 = vld [vmem:[%s5] sm:$0xff]
        %v1223 = vld [vmem:[%s5 + $0x8] sm:$0xff]
        %v1224 = vld [vmem:[%s5 + $0x10] sm:$0xff]
        %v1225 = vld [vmem:[%s5 + $0x18] sm:$0xff]
        %v1226 = vld [vmem:[%s5 + $0x20] sm:$0xff]
        %v1227 = vld [vmem:[%s5 + $0x28] sm:$0xff]
        %v1228 = vld [vmem:[%s5 + $0x30] sm:$0xff]
        %v1229 = vld [vmem:[%s5 + $0x38] sm:$0xff]
        %v1230 = vld [vmem:[%s5 + $0x40] sm:$0xff]
        %v1231 = vld [vmem:[%s5 + $0x48] sm:$0xff]
        %v1232 = vld [vmem:[%s5 + $0x50] sm:$0xff]
        %v1233 = vld [vmem:[%s5 + $0x58] sm:$0xff]
        %v1234 = vld [vmem:[%s5 + $0x60] sm:$0xff]
        %v1235 = vld [vmem:[%s5 + $0x68] sm:$0xff]
        %v1236 = vld [vmem:[%s5 + $0x70] sm:$0xff]
        %v1237 = vld [vmem:[%s5 + $0x78] sm:$0xff]
        %v1238 = vld [vmem:[%s5 + $0x80] sm:$0xff]
        %v1239 = vld [vmem:[%s5 + $0x88] sm:$0xff]
        %v1240 = vld [vmem:[%s5 + $0x90] sm:$0xff]
        %v1241 = vld [vmem:[%s5 + $0x98] sm:$0xff]
        %v1242 = vld [vmem:[%s5 + $0xa0] sm:$0xff]
        %v1243 = vld [vmem:[%s5 + $0xa8] sm:$0xff]
        %v1244 = vld [vmem:[%s5 + $0xb0] sm:$0xff]
        %v1245 = vld [vmem:[%s5 + $0xb8] sm:$0xff]
        %v1246 = vld [vmem:[%s5 + $0xc0] sm:$0xff]
        %v1247 = vld [vmem:[%s5 + $0xc8] sm:$0xff]
        %v1248 = vld [vmem:[%s5 + $0xd0] sm:$0xff]
        %v1249 = vld [vmem:[%s5 + $0xd8] sm:$0xff]
        %v1250 = vld [vmem:[%s5 + $0xe0] sm:$0xff]
        %v1251 = vld [vmem:[%s5 + $0xe8] sm:$0xff]
        %v1252 = vld [vmem:[%s5 + $0xf0] sm:$0xff]
        %v1253 = vld [vmem:[%s5 + $0xf8] sm:$0xff]
        %v1254 = vld [vmem:[%s5 + $0x100] sm:$0xff]
        %v1255 = vld [vmem:[%s5 + $0x108] sm:$0xff]
        %v1256 = vld [vmem:[%s5 + $0x110] sm:$0xff]
        %v1257 = vld [vmem:[%s5 + $0x118] sm:$0xff]
        %v1258 = vld [vmem:[%s5 + $0x120] sm:$0xff]
        %v1259 = vld [vmem:[%s5 + $0x128] sm:$0xff]
        %v1260 = vld [vmem:[%s5 + $0x130] sm:$0xff]
        %v1261 = vld [vmem:[%s5 + $0x138] sm:$0xff]
        %v1262 = vld [vmem:[%s6] sm:$0x1]
        %v1264 = vperm.slane %v1262, 0
        %v1267 = vsel %vm1044, %v1171, 0
        %v1270 = vsel %vm1044, %v1174, 0
        %v1273 = vsel %vm1044, %v1177, 0
        %v1276 = vsel %vm1044, %v1180, 0
        %1278 = vmatpush.msra.mxu0 %v1237
        %1279 = vmatpush.msra.mxu0 %v1236
        %1280 = vmatpush.msra.mxu0 %v1235
        %1281 = vmatpush.msra.mxu0 %v1234
        %1282 = vmatpush.msra.mxu0 %v1233
        %1283 = vmatpush.msra.mxu0 %v1232
        %1284 = vmatpush.msra.mxu0 %v1231
        %1285 = vmatpush.msra.mxu0 %v1230
        %1286 = vmatpush.msra.mxu0 %v1229
        %1287 = vmatpush.msra.mxu0 %v1228
        %1288 = vmatpush.msra.mxu0 %v1227
        %1289 = vmatpush.msra.mxu0 %v1226
        %1290 = vmatpush.msra.mxu0 %v1225
        %1291 = vmatpush.msra.mxu0 %v1224
        %1292 = vmatpush.msra.mxu0 %v1223
        %1293 = vmatpush.msra.mxu0 %v1222
        %1294 = vmatmul.f32.gmra.mxu0 %v1214
        %v1295 = vpop.f32.mrf.mxu0
        %v1296 = vadd.f32 %v1264, %v1295
        %1297 = vmatmul.f32.gmra.mxu0 %v1215
        %v1298 = vpop.f32.mrf.mxu0
        %v1299 = vadd.f32 %v1264, %v1298
        %1300 = vmatmul.f32.gmra.mxu0 %v1216
        %v1301 = vpop.f32.mrf.mxu0
        %v1302 = vadd.f32 %v1264, %v1301
        %1303 = vmatmul.f32.gmra.mxu0 %v1217
        %v1304 = vpop.f32.mrf.mxu0
        %v1305 = vadd.f32 %v1264, %v1304
        %1306 = vdwg.mxu0
        %1307 = vmatpush.msra.mxu0 %v1253
        %1308 = vmatpush.msra.mxu0 %v1252
        %1309 = vmatpush.msra.mxu0 %v1251
        %1310 = vmatpush.msra.mxu0 %v1250
        %1311 = vmatpush.msra.mxu0 %v1249
        %1312 = vmatpush.msra.mxu0 %v1248
        %1313 = vmatpush.msra.mxu0 %v1247
        %1314 = vmatpush.msra.mxu0 %v1246
        %1315 = vmatpush.msra.mxu0 %v1245
        %1316 = vmatpush.msra.mxu0 %v1244
        %1317 = vmatpush.msra.mxu0 %v1243
        %1318 = vmatpush.msra.mxu0 %v1242
        %1319 = vmatpush.msra.mxu0 %v1241
        %1320 = vmatpush.msra.mxu0 %v1240
        %1321 = vmatpush.msra.mxu0 %v1239
        %1322 = vmatpush.msra.mxu0 %v1238
        %1323 = vmatmul.f32.gmra.mxu0 %v1218
        %v1324 = vpop.f32.mrf.mxu0
        %v1325 = vadd.f32 %v1296, %v1324
        %1326 = vmatmul.f32.gmra.mxu0 %v1219
        %v1327 = vpop.f32.mrf.mxu0
        %v1328 = vadd.f32 %v1299, %v1327
        %1329 = vmatmul.f32.gmra.mxu0 %v1220
        %v1330 = vpop.f32.mrf.mxu0
        %v1331 = vadd.f32 %v1302, %v1330
        %1332 = vmatmul.f32.gmra.mxu0 %v1221
        %v1333 = vpop.f32.mrf.mxu0
        %v1334 = vadd.f32 %v1305, %v1333
        %1335 = vdwg.mxu0
        %1336 = vmatpush.msra.mxu0 0.0
        %1337 = vmatpush.msra.mxu0 0.0
        %1338 = vmatpush.msra.mxu0 0.0
        %1339 = vmatpush.msra.mxu0 0.0
        %1340 = vmatpush.msra.mxu0 0.0
        %1341 = vmatpush.msra.mxu0 0.0
        %1342 = vmatpush.msra.mxu0 0.0
        %1343 = vmatpush.msra.mxu0 0.0
        %1344 = vmatpush.msra.mxu0 %v1261
        %1345 = vmatpush.msra.mxu0 %v1260
        %1346 = vmatpush.msra.mxu0 %v1259
        %1347 = vmatpush.msra.mxu0 %v1258
        %1348 = vmatpush.msra.mxu0 %v1257
        %1349 = vmatpush.msra.mxu0 %v1256
        %1350 = vmatpush.msra.mxu0 %v1255
        %1351 = vmatpush.msra.mxu0 %v1254
        %1352 = vmatmul.f32.gmra.mxu0 %v1267
        %v1353 = vpop.f32.mrf.mxu0
        %v1354 = vadd.f32 %v1325, %v1353
        %1355 = vmatmul.f32.gmra.mxu0 %v1270
        %v1356 = vpop.f32.mrf.mxu0
        %v1357 = vadd.f32 %v1328, %v1356
        %1358 = vmatmul.f32.gmra.mxu0 %v1273
        %v1359 = vpop.f32.mrf.mxu0
        %v1360 = vadd.f32 %v1331, %v1359
        %1361 = vmatmul.f32.gmra.mxu0 %v1276
        %v1362 = vpop.f32.mrf.mxu0
        %v1363 = vadd.f32 %v1334, %v1362
        %1364 = vdwg.mxu0
        %v1365 = vmax.f32 %v1354, 0.0
        %v1366 = vmax.f32 %v1357, 0.0
        %v1367 = vmax.f32 %v1360, 0.0
        %v1368 = vmax.f32 %v1363, 0.0
        %v1369 = vld [vmem:[%s7] sm:$0xff]
        %v1370 = vld [vmem:[%s7 + $0x8] sm:$0xff]
        %v1371 = vld [vmem:[%s7 + $0x10] sm:$0xff]
        %v1372 = vld [vmem:[%s7 + $0x18] sm:$0xff]
        %v1373 = vld [vmem:[%s7 + $0x20] sm:$0xff]
        %v1374 = vld [vmem:[%s7 + $0x28] sm:$0xff]
        %v1376 = vsel %vm932, %v1369, 0
        %v1379 = vsel %vm932, %v1370, 0
        %v1382 = vsel %vm932, %v1371, 0
        %v1385 = vsel %vm932, %v1372, 0
        %v1388 = vsel %vm932, %v1373, 0
        %v1391 = vsel %vm932, %v1374, 0
        %1393 = vmatpush.msra.mxu0 0.0
        %1394 = vmatpush.msra.mxu0 0.0
        %1395 = vmatpush.msra.mxu0 0.0
        %1396 = vmatpush.msra.mxu0 0.0
        %1397 = vmatpush.msra.mxu0 0.0
        %1398 = vmatpush.msra.mxu0 0.0
        %1399 = vmatpush.msra.mxu0 0.0
        %1400 = vmatpush.msra.mxu0 0.0
        %1401 = vmatpush.msra.mxu0 0.0
        %1402 = vmatpush.msra.mxu0 0.0
        %1403 = vmatpush.msra.mxu0 0.0
        %1404 = vmatpush.msra.mxu0 0.0
        %1405 = vmatpush.msra.mxu0 %v1368
        %1406 = vmatpush.msra.mxu0 %v1367
        %1407 = vmatpush.msra.mxu0 %v1366
        %1408 = vmatpush.msra.mxu0 %v1365
        %1409 = vmatmul.f32.gmra.mxu0 %v1376
        %v1410 = vpop.f32.mrf.mxu0
        %v1411 = vadd.f32 0.0, %v1410
        %1412 = vmatmul.f32.gmra.mxu0 %v1379
        %v1413 = vpop.f32.mrf.mxu0
        %v1414 = vadd.f32 0.0, %v1413
        %1415 = vmatmul.f32.gmra.mxu0 %v1382
        %v1416 = vpop.f32.mrf.mxu0
        %v1417 = vadd.f32 0.0, %v1416
        %1418 = vmatmul.f32.gmra.mxu0 %v1385
        %v1419 = vpop.f32.mrf.mxu0
        %v1420 = vadd.f32 0.0, %v1419
        %1421 = vmatmul.f32.gmra.mxu0 %v1388
        %v1422 = vpop.f32.mrf.mxu0
        %v1423 = vadd.f32 0.0, %v1422
        %1424 = vmatmul.f32.gmra.mxu0 %v1391
        %v1425 = vpop.f32.mrf.mxu0
        %v1426 = vadd.f32 0.0, %v1425
        %1427 = vdwg.mxu0
        %1430 = vrot.lane.b32.xlu0 %v1417, 64
        %v1431 = vpop.permute.xlu0 %1430
        %1432 = vrot.lane.b32.xlu0 %v1420, 64
        %v1433 = vpop.permute.xlu0 %1432
        %v1436 = vsel %vm1044, %v1411, %v1431
        %v1437 = vsel %vm1044, %v1414, %v1433
        %v1438 = vld [vmem:[%s8] sm:$0xff]
        %v1439 = vld [vmem:[%s8 + $0x8] sm:$0xff]
        %v1440 = vld [vmem:[%s8 + $0x10] sm:$0xff]
        %v1441 = vld [vmem:[%s8 + $0x18] sm:$0xff]
        %v1442 = vld [vmem:[%s8 + $0x20] sm:$0xff]
        %v1443 = vld [vmem:[%s8 + $0x28] sm:$0xff]
        %v1444 = vld [vmem:[%s8 + $0x30] sm:$0xff]
        %v1445 = vld [vmem:[%s8 + $0x38] sm:$0xff]
        %v1446 = vld [vmem:[%s8 + $0x40] sm:$0xff]
        %v1447 = vld [vmem:[%s8 + $0x48] sm:$0xff]
        %v1448 = vld [vmem:[%s8 + $0x50] sm:$0xff]
        %v1449 = vld [vmem:[%s8 + $0x58] sm:$0xff]
        %v1450 = vld [vmem:[%s8 + $0x60] sm:$0xff]
        %v1451 = vld [vmem:[%s8 + $0x68] sm:$0xff]
        %v1452 = vld [vmem:[%s8 + $0x70] sm:$0xff]
        %v1453 = vld [vmem:[%s8 + $0x78] sm:$0xff]
        %v1454 = vld [vmem:[%s8 + $0x80] sm:$0xff]
        %v1455 = vld [vmem:[%s8 + $0x88] sm:$0xff]
        %v1456 = vld [vmem:[%s8 + $0x90] sm:$0xff]
        %v1457 = vld [vmem:[%s8 + $0x98] sm:$0xff]
        %v1458 = vld [vmem:[%s8 + $0xa0] sm:$0xff]
        %v1459 = vld [vmem:[%s8 + $0xa8] sm:$0xff]
        %v1460 = vld [vmem:[%s8 + $0xb0] sm:$0xff]
        %v1461 = vld [vmem:[%s8 + $0xb8] sm:$0xff]
        %v1462 = vld [vmem:[%s9] sm:$0x1]
        %v1464 = vperm.slane %v1462, 0
        %v1467 = vsel %vm1044, %v1423, 0
        %v1470 = vsel %vm1044, %v1426, 0
        %1472 = vmatpush.msra.mxu0 %v1453
        %1473 = vmatpush.msra.mxu0 %v1452
        %1474 = vmatpush.msra.mxu0 %v1451
        %1475 = vmatpush.msra.mxu0 %v1450
        %1476 = vmatpush.msra.mxu0 %v1449
        %1477 = vmatpush.msra.mxu0 %v1448
        %1478 = vmatpush.msra.mxu0 %v1447
        %1479 = vmatpush.msra.mxu0 %v1446
        %1480 = vmatpush.msra.mxu0 %v1445
        %1481 = vmatpush.msra.mxu0 %v1444
        %1482 = vmatpush.msra.mxu0 %v1443
        %1483 = vmatpush.msra.mxu0 %v1442
        %1484 = vmatpush.msra.mxu0 %v1441
        %1485 = vmatpush.msra.mxu0 %v1440
        %1486 = vmatpush.msra.mxu0 %v1439
        %1487 = vmatpush.msra.mxu0 %v1438
        %1488 = vmatmul.f32.gmra.mxu0 %v1436
        %v1489 = vpop.f32.mrf.mxu0
        %v1490 = vadd.f32 %v1464, %v1489
        %1491 = vmatmul.f32.gmra.mxu0 %v1437
        %v1492 = vpop.f32.mrf.mxu0
        %v1493 = vadd.f32 %v1464, %v1492
        %1494 = vdwg.mxu0
        %1495 = vmatpush.msra.mxu0 0.0
        %1496 = vmatpush.msra.mxu0 0.0
        %1497 = vmatpush.msra.mxu0 0.0
        %1498 = vmatpush.msra.mxu0 0.0
        %1499 = vmatpush.msra.mxu0 0.0
        %1500 = vmatpush.msra.mxu0 0.0
        %1501 = vmatpush.msra.mxu0 0.0
        %1502 = vmatpush.msra.mxu0 0.0
        %1503 = vmatpush.msra.mxu0 %v1461
        %1504 = vmatpush.msra.mxu0 %v1460
        %1505 = vmatpush.msra.mxu0 %v1459
        %1506 = vmatpush.msra.mxu0 %v1458
        %1507 = vmatpush.msra.mxu0 %v1457
        %1508 = vmatpush.msra.mxu0 %v1456
        %1509 = vmatpush.msra.mxu0 %v1455
        %1510 = vmatpush.msra.mxu0 %v1454
        %1511 = vmatmul.f32.gmra.mxu0 %v1467
        %v1512 = vpop.f32.mrf.mxu0
        %v1513 = vadd.f32 %v1490, %v1512
        %1514 = vmatmul.f32.gmra.mxu0 %v1470
        %v1515 = vpop.f32.mrf.mxu0
        %v1516 = vadd.f32 %v1493, %v1515
        %1517 = vdwg.mxu0
        %v1518 = vmax.f32 %v1513, 0.0
        %v1519 = vmax.f32 %v1516, 0.0
        %v1520 = vld [vmem:[%s10] sm:$0xff]
        %v1521 = vld [vmem:[%s10 + $0x8] sm:$0xff]
        %v1522 = vld [vmem:[%s10 + $0x10] sm:$0xff]
        %v1524 = vsel %vm914, %v1520, 0
        %v1527 = vsel %vm914, %v1521, 0
        %v1530 = vsel %vm914, %v1522, 0
        %1532 = vmatpush.msra.mxu0 0.0
        %1533 = vmatpush.msra.mxu0 0.0
        %1534 = vmatpush.msra.mxu0 0.0
        %1535 = vmatpush.msra.mxu0 0.0
        %1536 = vmatpush.msra.mxu0 0.0
        %1537 = vmatpush.msra.mxu0 0.0
        %1538 = vmatpush.msra.mxu0 0.0
        %1539 = vmatpush.msra.mxu0 0.0
        %1540 = vmatpush.msra.mxu0 0.0
        %1541 = vmatpush.msra.mxu0 0.0
        %1542 = vmatpush.msra.mxu0 0.0
        %1543 = vmatpush.msra.mxu0 0.0
        %1544 = vmatpush.msra.mxu0 0.0
        %1545 = vmatpush.msra.mxu0 0.0
        %1546 = vmatpush.msra.mxu0 %v1519
        %1547 = vmatpush.msra.mxu0 %v1518
        %1548 = vmatmul.f32.gmra.mxu0 %v1524
        %v1549 = vpop.f32.mrf.mxu0
        %v1550 = vadd.f32 0.0, %v1549
        %1551 = vmatmul.f32.gmra.mxu0 %v1527
        %v1552 = vpop.f32.mrf.mxu0
        %v1553 = vadd.f32 0.0, %v1552
        %1554 = vmatmul.f32.gmra.mxu0 %v1530
        %v1555 = vpop.f32.mrf.mxu0
        %v1556 = vadd.f32 0.0, %v1555
        %1557 = vdwg.mxu0
        %1559 = vrot.lane.b32.xlu0 %v1553, 64
        %v1560 = vpop.permute.xlu0 %1559
        %v1562 = vsel %vm1044, %v1550, %v1560
        %v1563 = vld [vmem:[%s11] sm:$0xff]
        %v1564 = vld [vmem:[%s11 + $0x8] sm:$0xff]
        %v1565 = vld [vmem:[%s11 + $0x10] sm:$0xff]
        %v1566 = vld [vmem:[%s11 + $0x18] sm:$0xff]
        %v1567 = vld [vmem:[%s11 + $0x20] sm:$0xff]
        %v1568 = vld [vmem:[%s11 + $0x28] sm:$0xff]
        %v1569 = vld [vmem:[%s11 + $0x30] sm:$0xff]
        %v1570 = vld [vmem:[%s11 + $0x38] sm:$0xff]
        %v1571 = vld [vmem:[%s11 + $0x40] sm:$0xff]
        %v1572 = vld [vmem:[%s11 + $0x48] sm:$0xff]
        %v1573 = vld [vmem:[%s11 + $0x50] sm:$0xff]
        %v1574 = vld [vmem:[%s11 + $0x58] sm:$0xff]
        %v1575 = vld [vmem:[%s11 + $0x60] sm:$0xff]
        %v1576 = vld [vmem:[%s11 + $0x68] sm:$0xff]
        %v1577 = vld [vmem:[%s11 + $0x70] sm:$0xff]
        %v1578 = vld [vmem:[%s11 + $0x78] sm:$0xff]
        %v1579 = vld [vmem:[%s11 + $0x80] sm:$0xff]
        %v1580 = vld [vmem:[%s11 + $0x88] sm:$0xff]
        %v1581 = vld [vmem:[%s11 + $0x90] sm:$0xff]
        %v1582 = vld [vmem:[%s11 + $0x98] sm:$0xff]
        %v1583 = vld [vmem:[%s11 + $0xa0] sm:$0xff]
        %v1584 = vld [vmem:[%s11 + $0xa8] sm:$0xff]
        %v1585 = vld [vmem:[%s11 + $0xb0] sm:$0xff]
        %v1586 = vld [vmem:[%s11 + $0xb8] sm:$0xff]
        %v1587 = vld [vmem:[%s12] sm:$0x1]
        %v1589 = vperm.slane %v1587, 0
        %v1592 = vsel %vm1044, %v1556, 0
        %1594 = vmatpush.msra.mxu0 %v1578
        %1595 = vmatpush.msra.mxu0 %v1577
        %1596 = vmatpush.msra.mxu0 %v1576
        %1597 = vmatpush.msra.mxu0 %v1575
        %1598 = vmatpush.msra.mxu0 %v1574
        %1599 = vmatpush.msra.mxu0 %v1573
        %1600 = vmatpush.msra.mxu0 %v1572
        %1601 = vmatpush.msra.mxu0 %v1571
        %1602 = vmatpush.msra.mxu0 %v1570
        %1603 = vmatpush.msra.mxu0 %v1569
        %1604 = vmatpush.msra.mxu0 %v1568
        %1605 = vmatpush.msra.mxu0 %v1567
        %1606 = vmatpush.msra.mxu0 %v1566
        %1607 = vmatpush.msra.mxu0 %v1565
        %1608 = vmatpush.msra.mxu0 %v1564
        %1609 = vmatpush.msra.mxu0 %v1563
        %1610 = vmatmul.f32.gmra.mxu0 %v1562
        %v1611 = vpop.f32.mrf.mxu0
        %v1612 = vadd.f32 %v1589, %v1611
        %1613 = vdwg.mxu0
        %1614 = vmatpush.msra.mxu0 0.0
        %1615 = vmatpush.msra.mxu0 0.0
        %1616 = vmatpush.msra.mxu0 0.0
        %1617 = vmatpush.msra.mxu0 0.0
        %1618 = vmatpush.msra.mxu0 0.0
        %1619 = vmatpush.msra.mxu0 0.0
        %1620 = vmatpush.msra.mxu0 0.0
        %1621 = vmatpush.msra.mxu0 0.0
        %1622 = vmatpush.msra.mxu0 %v1586
        %1623 = vmatpush.msra.mxu0 %v1585
        %1624 = vmatpush.msra.mxu0 %v1584
        %1625 = vmatpush.msra.mxu0 %v1583
        %1626 = vmatpush.msra.mxu0 %v1582
        %1627 = vmatpush.msra.mxu0 %v1581
        %1628 = vmatpush.msra.mxu0 %v1580
        %1629 = vmatpush.msra.mxu0 %v1579
        %1630 = vmatmul.f32.gmra.mxu0 %v1592
        %v1631 = vpop.f32.mrf.mxu0
        %v1632 = vadd.f32 %v1612, %v1631
        %1633 = vdwg.mxu0
        %v1634 = vmax.f32 %v1632, 0.0
        %v1635 = vld [vmem:[%s13] sm:$0xf]
        %v1637 = vsel %vm905, %v1635, 0
        %1639 = vmatpush.msra.mxu0 0.0
        %1640 = vmatpush.msra.mxu0 0.0
        %1641 = vmatpush.msra.mxu0 0.0
        %1642 = vmatpush.msra.mxu0 0.0
        %1643 = vmatpush.msra.mxu0 0.0
        %1644 = vmatpush.msra.mxu0 0.0
        %1645 = vmatpush.msra.mxu0 0.0
        %1646 = vmatpush.msra.mxu0 0.0
        %1647 = vmatpush.msra.mxu0 0.0
        %1648 = vmatpush.msra.mxu0 0.0
        %1649 = vmatpush.msra.mxu0 0.0
        %1650 = vmatpush.msra.mxu0 0.0
        %1651 = vmatpush.msra.mxu0 0.0
        %1652 = vmatpush.msra.mxu0 0.0
        %1653 = vmatpush.msra.mxu0 0.0
        %1654 = vmatpush.msra.mxu0 %v1634
        %1655 = vmatmul.f32.gmra.mxu0 %v1637
        %v1656 = vpop.f32.mrf.mxu0
        %v1657 = vadd.f32 0.0, %v1656
        %1658 = vdwg.mxu0
        %vm1659 = vcmask 519168
        %1660 = vst.msk [vmem:[%s460] sm:$0xf] %vm1659, %v1657
        %s1661 = sand.u32 %s335, 1
        %s1662 = scalar_lea.sflag [#allocation3], %s1661
        %s1663 = sand.u32 %s335, 1
        %s1664 = smul.addr %s1663, 4
        %s1665 = scalar_lea.vmem [#allocation2], %s1664
        // Predicated region
        $region77: #{tpu_custom_call.1} parent=75 // pred_check
          %p1666 = pneg %p345
        $region78: #{tpu_custom_call.1} parent=75 // pred_check_branch
          %1668 = sbr.rel (%p1666) target = $region80
        $region79: #{tpu_custom_call.1} parent=75 // pred_region
          %1670 = vsyncadd %s1662, 0
          %s1671 = smul.addr %s28, 4
          %s1672 = scalar_lea.hbm %s14, %s1671
          %s1674 = sshll.u32 %s1665, 4
          %s1675 = int_to_ptr.vmem [resolvable:$true] %s1674
          %s1676 = sshll.u32 %s1672, 4
          %s1677 = int_to_ptr.hbm [resolvable:$true] %s1676
          %1679 = dma.vmem_to_hbm [thread:$0]  %s1675, 64, %s1677, %s1662
        $region80: #{tpu_custom_call.1} parent=75 // pred_fallthru
          _
      $region76: #{tpu_custom_call.1} parent=5 // pred_fallthru
        _
      %p1680 = scmp.le.s32.totalorder 2, %s23
      // Predicated region
      $region81: #{tpu_custom_call.1} parent=5 // pred_check
        %p1681 = pneg %p1680
      $region82: #{tpu_custom_call.1} parent=5 // pred_check_branch
        %1683 = sbr.rel (%p1681) target = $region84
      $region83: #{tpu_custom_call.1} parent=5 // pred_region
        %s1684 = ssub.s32 %s23, 2
        // Predicated region
        $region85: #{tpu_custom_call.1} parent=83 // pred_check
          %p1685 = pneg %p351
        $region86: #{tpu_custom_call.1} parent=83 // pred_check_branch
          %1687 = sbr.rel (%p1685) target = $region88
        $region87: #{tpu_custom_call.1} parent=83 // pred_region
          %s1688 = sand.u32 %s336, 1
          %s1689 = scalar_lea.sflag [#allocation3], %s1688
          %s1690 = sand.u32 %s336, 1
          %s1691 = smul.addr %s1690, 4
          %s1692 = scalar_lea.vmem [#allocation2], %s1691
          %1694 = dma.done %s1689, 64
        $region88: #{tpu_custom_call.1} parent=83 // pred_fallthru
          _
      $region84: #{tpu_custom_call.1} parent=5 // pred_fallthru
        _
    $region6: #{tpu_custom_call.1} parent=1 // loop_footer
      %s27 = sadd.s32 1, %s23
    $region7: #{tpu_custom_call.1} parent=1 // loop_footer_branch
      %22 = sbr.rel target = $region3
    $region8: #{tpu_custom_call.1} parent=1 // loop_exit
      _
    %1695 = vsyncpa [#allocation3], 1
    %s1696 = scalar_lea.sflag [#allocation3], 1
    %1697 = vsyncpa %s1696, 1

</llo_original>
